<compile_context>
chip_gen: v5e
topology: v5e:2x2
jax: 0.10.0
libtpu: 0.0.40
codegen_flags: <defaults>
</compile_context>

<pallas_src>
import jax
import jax.numpy as jnp
from jax.experimental import pallas as pl
from jax.experimental.pallas import tpu as pltpu

INPUT_SIZE = 784
H1 = 128
H2 = 32


def _round_up(x, m):
    return (x + m - 1) // m * m


def _mlp_kernel(x_ref,
                w1_ref, b1_ref,
                w2_ref, b2_ref,
                w3_ref, b3_ref,
                w4_ref, b4_ref,
                o_ref):
    cdt = w1_ref.dtype  # compute dtype (bf16 by default); accumulation + biases are f32

    x = x_ref[...].astype(cdt)  # in-kernel cast: no extra HBM pass in the wrapper
    h = jnp.dot(x, w1_ref[...], preferred_element_type=jnp.float32) + b1_ref[...]
    h = jnp.maximum(h, 0.0)                                    # relu

    h = jnp.dot(h.astype(cdt), w2_ref[...], preferred_element_type=jnp.float32) + b2_ref[...]
    h = jnp.maximum(h, 0.0)                                    # relu

    h = jnp.dot(h.astype(cdt), w3_ref[...], preferred_element_type=jnp.float32) + b3_ref[...]
    h = jnp.maximum(h, 0.0)                                    # relu

    h = jnp.dot(h.astype(cdt), w4_ref[...], preferred_element_type=jnp.float32) + b4_ref[...]
    h = jax.nn.sigmoid(h)                                      # sigmoid

    o_ref[...] = h.astype(o_ref.dtype)


def prepare_params(params, compute_dtype=jnp.bfloat16):
    """One-time param prep (hoisted out of the forward): weights -> compute dtype
    (pre-transposed [in, out]), biases -> f32 [1, out]. Returns a flat tuple."""
    prepped = []
    for name in ("lin1", "lin2", "lin3", "lin4"):
        w, b = params[name]
        prepped.append(w.astype(compute_dtype))
        prepped.append(b.astype(jnp.float32))
    return tuple(prepped)


def mnist_autoencoder_forward(x, prepared_params, *, batch_tile=512, out_dtype=None):
    """x: [B, 784]. prepared_params: output of prepare_params()."""
    B, F_in = x.shape
    assert F_in == INPUT_SIZE
    w1, b1, w2, b2, w3, b3, w4, b4 = prepared_params
    assert w1.shape == (INPUT_SIZE, H1) and w4.shape == (H1, INPUT_SIZE)
    out_dtype = x.dtype if out_dtype is None else out_dtype

    # Batch tile: multiple of 8 sublanes, capped by the (rounded-up) batch.
    bt = max(8, min(_round_up(batch_tile, 8), _round_up(B, 8)))
    # Prefer >= 2 grid steps so both v7x TensorCores get work under "parallel" semantics
    # (and per-step overhead still amortizes fine on v6e/v5e at these tile sizes).
    if pl.cdiv(B, bt) < 2 and B > 8:
        bt = max(8, _round_up(pl.cdiv(B, 2), 8))
    grid = (pl.cdiv(B, bt),)  # last block may be partial; OOB rows are masked on store

    def resident(shape):
        # Weights / biases: one block, identical index for every grid step (no re-DMA).
        return pl.BlockSpec(shape, lambda i: (0, 0))

    flops = 2 * B * (INPUT_SIZE * H1 + H1 * H2 + H2 * H1 + H1 * INPUT_SIZE)
    weight_bytes = sum(int(a.size) * a.dtype.itemsize for a in prepared_params)
    bytes_accessed = (int(x.size) * x.dtype.itemsize                     # streamed input
                      + B * INPUT_SIZE * jnp.dtype(out_dtype).itemsize   # streamed output
                      + weight_bytes)                                    # resident weights
    cost = pl.CostEstimate(flops=int(flops),
                           transcendentals=int(B * INPUT_SIZE),
                           bytes_accessed=int(bytes_accessed))

    # TODO(synk): if post-fix profiling ever shows the kernel compute/store-bound on v7x,
    # chunk the 784-wide last layer into 128-lane pieces to cut the live f32 intermediate.
    return pl.pallas_call(
        _mlp_kernel,
        out_shape=jax.ShapeDtypeStruct((B, INPUT_SIZE), out_dtype),
        grid=grid,
        in_specs=[
            pl.BlockSpec((bt, INPUT_SIZE), lambda i: (i, 0)),            # x tile
            resident(w1.shape), resident(b1.shape),
            resident(w2.shape), resident(b2.shape),
            resident(w3.shape), resident(b3.shape),
            resident(w4.shape), resident(b4.shape),
        ],
        out_specs=pl.BlockSpec((bt, INPUT_SIZE), lambda i: (i, 0)),
        compiler_params=pltpu.CompilerParams(
            dimension_semantics=("parallel",)),
        cost_estimate=cost,
    )(x, w1, b1, w2, b2, w3, b3, w4, b4)


def init_params(key, input_size=INPUT_SIZE, output_size=INPUT_SIZE):
    """PyTorch nn.Linear-style init (U[-1/sqrt(fan_in), 1/sqrt(fan_in)]).

    Weights are stored transposed ([in, out]) relative to PyTorch so the kernel
    computes y = x @ W + b directly.
    """
    dims = [(input_size, H1), (H1, H2), (H2, H1), (H1, output_size)]
    names = ["lin1", "lin2", "lin3", "lin4"]
    params = {}
    for name, (fan_in, fan_out) in zip(names, dims):
        key, kw, kb = jax.random.split(key, 3)
        bound = 1.0 / jnp.sqrt(fan_in)
        w = jax.random.uniform(kw, (fan_in, fan_out), jnp.float32, -bound, bound)
        b = jax.random.uniform(kb, (1, fan_out), jnp.float32, -bound, bound)
        params[name] = (w, b)
    return params


def reference_forward(x, params):
    """Pure-JAX f32 reference matching the PyTorch forward."""
    h = x
    w, b = params["lin1"]; h = jax.nn.relu(h @ w + b)
    w, b = params["lin2"]; h = jax.nn.relu(h @ w + b)
    w, b = params["lin3"]; h = jax.nn.relu(h @ w + b)
    w, b = params["lin4"]; h = jax.nn.sigmoid(h @ w + b)
    return h


if __name__ == "__main__":
    key = jax.random.PRNGKey(0)
    key, kx = jax.random.split(key)

    B = 32  # small smoke-test batch (tile logic adapts; real workloads use >=512)
    x = jax.random.uniform(kx, (B, INPUT_SIZE), jnp.float32)  # MNIST-like pixels in [0,1)

    params = init_params(jax.random.PRNGKey(0))
    ref = reference_forward(x, params)

    # bf16 compute path (default, MXU-friendly) — looser tolerance.
    prepped_bf16 = prepare_params(params, jnp.bfloat16)        # one-time prep
    out_bf16 = jax.block_until_ready(mnist_autoencoder_forward(x, prepped_bf16))
    assert out_bf16.shape == (B, INPUT_SIZE)
    assert out_bf16.dtype == x.dtype
    assert jnp.allclose(out_bf16, ref, atol=2e-2, rtol=0.0), "bf16 path mismatch vs reference"

    # f32 compute path — tight tolerance sanity check of kernel structure / tiling.
    prepped_f32 = prepare_params(params, jnp.float32)
    out_f32 = jax.block_until_ready(mnist_autoencoder_forward(x, prepped_f32))
    assert jnp.allclose(out_f32, ref, atol=1e-5, rtol=1e-5), "f32 path mismatch vs reference"

    print("KERNEL_OK")
</pallas_src>

<mosaic_0001>
module attributes {stable_mosaic.version = 11 : i64} {
  func.func @_mlp_kernel(%arg0: i32, %arg1: memref<16x784xf32, #tpu.memory_space<vmem>>, %arg2: memref<784x128xbf16, #tpu.memory_space<vmem>>, %arg3: memref<1x128xf32, #tpu.memory_space<vmem>>, %arg4: memref<128x32xbf16, #tpu.memory_space<vmem>>, %arg5: memref<1x32xf32, #tpu.memory_space<vmem>>, %arg6: memref<32x128xbf16, #tpu.memory_space<vmem>>, %arg7: memref<1x128xf32, #tpu.memory_space<vmem>>, %arg8: memref<128x784xbf16, #tpu.memory_space<vmem>>, %arg9: memref<1x784xf32, #tpu.memory_space<vmem>>, %arg10: memref<16x784xf32, #tpu.memory_space<vmem>>) attributes {dimension_semantics = [#tpu.dimension_semantics<parallel>], iteration_bounds = array<i64: 2>, scalar_prefetch = 0 : i64, scratch_operands = 0 : i64, tpu.core_type = #tpu.core_type<tc>, window_params = [{transform_indices = @transform_0, window_bounds = array<i64: 16, 784>}, {pipeline_mode = #tpu.pipeline_mode<synchronous>, transform_indices = @transform_1, window_bounds = array<i64: 784, 128>}, {pipeline_mode = #tpu.pipeline_mode<synchronous>, transform_indices = @transform_2, window_bounds = array<i64: 1, 128>}, {pipeline_mode = #tpu.pipeline_mode<synchronous>, transform_indices = @transform_3, window_bounds = array<i64: 128, 32>}, {pipeline_mode = #tpu.pipeline_mode<synchronous>, transform_indices = @transform_4, window_bounds = array<i64: 1, 32>}, {pipeline_mode = #tpu.pipeline_mode<synchronous>, transform_indices = @transform_5, window_bounds = array<i64: 32, 128>}, {pipeline_mode = #tpu.pipeline_mode<synchronous>, transform_indices = @transform_6, window_bounds = array<i64: 1, 128>}, {pipeline_mode = #tpu.pipeline_mode<synchronous>, transform_indices = @transform_7, window_bounds = array<i64: 128, 784>}, {pipeline_mode = #tpu.pipeline_mode<synchronous>, transform_indices = @transform_8, window_bounds = array<i64: 1, 784>}, {transform_indices = @transform_9, window_bounds = array<i64: 16, 784>}]} {
    %c0 = arith.constant 0 : index
    %c0_0 = arith.constant 0 : index
    %0 = vector.load %arg1[%c0, %c0_0] : memref<16x784xf32, #tpu.memory_space<vmem>>, vector<16x784xf32>
    %1 = arith.truncf %0 : vector<16x784xf32> to vector<16x784xbf16>
    %c0_1 = arith.constant 0 : index
    %c0_2 = arith.constant 0 : index
    %2 = vector.load %arg2[%c0_1, %c0_2] : memref<784x128xbf16, #tpu.memory_space<vmem>>, vector<784x128xbf16>
    %cst = arith.constant dense<0.000000e+00> : vector<16x128xf32>
    %3 = tpu.matmul %1, %2, %cst {dimension_numbers = #tpu.dot_dimension_numbers<[1], [0], [0], [1], [0, 0, 1, 1], [], []>} : vector<16x784xbf16>, vector<784x128xbf16>, vector<16x128xf32> -> vector<16x128xf32>
    %c0_3 = arith.constant 0 : index
    %c0_4 = arith.constant 0 : index
    %4 = vector.load %arg3[%c0_3, %c0_4] : memref<1x128xf32, #tpu.memory_space<vmem>>, vector<1x128xf32>
    %5 = vector.broadcast %4 : vector<1x128xf32> to vector<16x128xf32>
    %6 = arith.addf %3, %5 : vector<16x128xf32>
    %cst_5 = arith.constant 0.000000e+00 : f32
    %7 = vector.broadcast %cst_5 : f32 to vector<16x128xf32>
    %8 = arith.maximumf %6, %7 : vector<16x128xf32>
    %9 = arith.truncf %8 : vector<16x128xf32> to vector<16x128xbf16>
    %c0_6 = arith.constant 0 : index
    %c0_7 = arith.constant 0 : index
    %10 = vector.load %arg4[%c0_6, %c0_7] : memref<128x32xbf16, #tpu.memory_space<vmem>>, vector<128x32xbf16>
    %cst_8 = arith.constant dense<0.000000e+00> : vector<16x32xf32>
    %11 = tpu.matmul %9, %10, %cst_8 {dimension_numbers = #tpu.dot_dimension_numbers<[1], [0], [0], [1], [0, 0, 1, 1], [], []>} : vector<16x128xbf16>, vector<128x32xbf16>, vector<16x32xf32> -> vector<16x32xf32>
    %c0_9 = arith.constant 0 : index
    %c0_10 = arith.constant 0 : index
    %12 = vector.load %arg5[%c0_9, %c0_10] : memref<1x32xf32, #tpu.memory_space<vmem>>, vector<1x32xf32>
    %13 = vector.broadcast %12 : vector<1x32xf32> to vector<16x32xf32>
    %14 = arith.addf %11, %13 : vector<16x32xf32>
    %cst_11 = arith.constant 0.000000e+00 : f32
    %15 = vector.broadcast %cst_11 : f32 to vector<16x32xf32>
    %16 = arith.maximumf %14, %15 : vector<16x32xf32>
    %17 = arith.truncf %16 : vector<16x32xf32> to vector<16x32xbf16>
    %c0_12 = arith.constant 0 : index
    %c0_13 = arith.constant 0 : index
    %18 = vector.load %arg6[%c0_12, %c0_13] : memref<32x128xbf16, #tpu.memory_space<vmem>>, vector<32x128xbf16>
    %cst_14 = arith.constant dense<0.000000e+00> : vector<16x128xf32>
    %19 = tpu.matmul %17, %18, %cst_14 {dimension_numbers = #tpu.dot_dimension_numbers<[1], [0], [0], [1], [0, 0, 1, 1], [], []>} : vector<16x32xbf16>, vector<32x128xbf16>, vector<16x128xf32> -> vector<16x128xf32>
    %c0_15 = arith.constant 0 : index
    %c0_16 = arith.constant 0 : index
    %20 = vector.load %arg7[%c0_15, %c0_16] : memref<1x128xf32, #tpu.memory_space<vmem>>, vector<1x128xf32>
    %21 = vector.broadcast %20 : vector<1x128xf32> to vector<16x128xf32>
    %22 = arith.addf %19, %21 : vector<16x128xf32>
    %cst_17 = arith.constant 0.000000e+00 : f32
    %23 = vector.broadcast %cst_17 : f32 to vector<16x128xf32>
    %24 = arith.maximumf %22, %23 : vector<16x128xf32>
    %25 = arith.truncf %24 : vector<16x128xf32> to vector<16x128xbf16>
    %c0_18 = arith.constant 0 : index
    %c0_19 = arith.constant 0 : index
    %26 = vector.load %arg8[%c0_18, %c0_19] : memref<128x784xbf16, #tpu.memory_space<vmem>>, vector<128x784xbf16>
    %cst_20 = arith.constant dense<0.000000e+00> : vector<16x784xf32>
    %27 = tpu.matmul %25, %26, %cst_20 {dimension_numbers = #tpu.dot_dimension_numbers<[1], [0], [0], [1], [0, 0, 1, 1], [], []>} : vector<16x128xbf16>, vector<128x784xbf16>, vector<16x784xf32> -> vector<16x784xf32>
    %c0_21 = arith.constant 0 : index
    %c0_22 = arith.constant 0 : index
    %28 = vector.load %arg9[%c0_21, %c0_22] : memref<1x784xf32, #tpu.memory_space<vmem>>, vector<1x784xf32>
    %29 = vector.broadcast %28 : vector<1x784xf32> to vector<16x784xf32>
    %30 = arith.addf %27, %29 : vector<16x784xf32>
    %31 = arith.negf %30 : vector<16x784xf32>
    %32 = math.exp %31 : vector<16x784xf32>
    %cst_23 = arith.constant 1.000000e+00 : f32
    %33 = vector.broadcast %cst_23 : f32 to vector<16x784xf32>
    %34 = arith.addf %33, %32 : vector<16x784xf32>
    %35 = arith.divf %33, %34 : vector<16x784xf32>
    %c0_24 = arith.constant 0 : index
    %c0_25 = arith.constant 0 : index
    %36 = vector.load %arg10[%c0_24, %c0_25] : memref<16x784xf32, #tpu.memory_space<vmem>>, vector<16x784xf32>
    tpu.vector_store %arg10[%c0_24, %c0_25], %35 {strides = array<i32>} : memref<16x784xf32, #tpu.memory_space<vmem>>, vector<16x784xf32>,
    return
  }
  func.func @transform_0(%arg0: i32) -> (i32, i32) {
    %c0_i32 = arith.constant 0 : i32
    %c0_i32_0 = arith.constant 0 : i32
    return %arg0, %c0_i32 : i32, i32
  }
  func.func @transform_1(%arg0: i32) -> (i32, i32) {
    %c0_i32 = arith.constant 0 : i32
    %c0_i32_0 = arith.constant 0 : i32
    %c0_i32_1 = arith.constant 0 : i32
    return %c0_i32, %c0_i32_0 : i32, i32
  }
  func.func @transform_2(%arg0: i32) -> (i32, i32) {
    %c0_i32 = arith.constant 0 : i32
    %c0_i32_0 = arith.constant 0 : i32
    %c0_i32_1 = arith.constant 0 : i32
    return %c0_i32, %c0_i32_0 : i32, i32
  }
  func.func @transform_3(%arg0: i32) -> (i32, i32) {
    %c0_i32 = arith.constant 0 : i32
    %c0_i32_0 = arith.constant 0 : i32
    %c0_i32_1 = arith.constant 0 : i32
    return %c0_i32, %c0_i32_0 : i32, i32
  }
  func.func @transform_4(%arg0: i32) -> (i32, i32) {
    %c0_i32 = arith.constant 0 : i32
    %c0_i32_0 = arith.constant 0 : i32
    %c0_i32_1 = arith.constant 0 : i32
    return %c0_i32, %c0_i32_0 : i32, i32
  }
  func.func @transform_5(%arg0: i32) -> (i32, i32) {
    %c0_i32 = arith.constant 0 : i32
    %c0_i32_0 = arith.constant 0 : i32
    %c0_i32_1 = arith.constant 0 : i32
    return %c0_i32, %c0_i32_0 : i32, i32
  }
  func.func @transform_6(%arg0: i32) -> (i32, i32) {
    %c0_i32 = arith.constant 0 : i32
    %c0_i32_0 = arith.constant 0 : i32
    %c0_i32_1 = arith.constant 0 : i32
    return %c0_i32, %c0_i32_0 : i32, i32
  }
  func.func @transform_7(%arg0: i32) -> (i32, i32) {
    %c0_i32 = arith.constant 0 : i32
    %c0_i32_0 = arith.constant 0 : i32
    %c0_i32_1 = arith.constant 0 : i32
    return %c0_i32, %c0_i32_0 : i32, i32
  }
  func.func @transform_8(%arg0: i32) -> (i32, i32) {
    %c0_i32 = arith.constant 0 : i32
    %c0_i32_0 = arith.constant 0 : i32
    %c0_i32_1 = arith.constant 0 : i32
    return %c0_i32, %c0_i32_0 : i32, i32
  }
  func.func @transform_9(%arg0: i32) -> (i32, i32) {
    %c0_i32 = arith.constant 0 : i32
    %c0_i32_0 = arith.constant 0 : i32
    return %arg0, %c0_i32 : i32, i32
  }
}

</mosaic_0001>

<llo_original>
// kernel: tpu_custom_call.1
$region0: #{tpu_custom_call.1}
  #allocation0 [shape = 'u32[]', space=smem, size = 0x4, offset = 0x4, fixed_abs, tag = 'smem constant byte address 0x4 - core index']
  #allocation1 [shape = 'u32[72,128]{1,0:T(1,128)}', space=vmem, size = 0x9000, scoped, tag = 'internal scratch']
  %s0 = inlined_call_operand.vmem [shape: f32[32,784], index: 0, kind: input, shape index: {}]
  %s1 = inlined_call_operand.vmem [shape: bf16[784,128], index: 1, kind: input, shape index: {}]
  %s2 = inlined_call_operand.vmem [shape: f32[1,128], index: 2, kind: input, shape index: {}]
  %s3 = inlined_call_operand.vmem [shape: bf16[128,32], index: 3, kind: input, shape index: {}]
  %s4 = inlined_call_operand.vmem [shape: f32[1,32], index: 4, kind: input, shape index: {}]
  %s5 = inlined_call_operand.vmem [shape: bf16[32,128], index: 5, kind: input, shape index: {}]
  %s6 = inlined_call_operand.vmem [shape: f32[1,128], index: 6, kind: input, shape index: {}]
  %s7 = inlined_call_operand.vmem [shape: bf16[128,784], index: 7, kind: input, shape index: {}]
  %s8 = inlined_call_operand.vmem [shape: f32[1,784], index: 8, kind: input, shape index: {}]
  %s9 = inlined_call_operand.hbm [shape: f32[32,784], index: 9, kind: output, shape index: {}]
  %s10 = sld [smem:[#allocation0]]
  $region69: #{tpu_custom_call.1} parent=0
    _
  %s12 = ssub.s32 1, %s10
  %s13 = scalar_select 0, %s12, %s10
  $region1: #{tpu_custom_call.1} parent=0
    #allocation2 [shape = 'u8[114688]{0}', space=vmem, size = 0x1c000, scoped, tag = 'output window, operand 0']
    #allocation3 [shape = 's32[2]{0}', space=sflag, size = 0x8, scoped, tag = 'scoped memory for tpu_custom_call.1']
    %14 = vsyncpa [#allocation3], 0
    %s15 = scalar_lea.sflag [#allocation3], 1
    %16 = vsyncpa %s15, 0
    loop: start=0, step=1, limit=4
    $region2: #{tpu_custom_call.1} parent=1 // loop_pre_header
      _
    $region3: #{tpu_custom_call.1} parent=1 // loop_header
      %s18 = sphi 0, %s22
      %p19 = scmp.ge.s32.totalorder %s18, 4
      %s28 = sphi 0, %s30
      %s31 = sphi 0, %s28
      %s32 = sphi 0, %s31
      %s48 = sphi 0, %s32
      %s52 = sphi 0, %s52
      %s54 = sphi 0, %s52
      %s55 = sphi 0, %s54
      %s69 = sphi 0, %s55
      %s73 = sphi 0, %s73
      %s75 = sphi 0, %s73
      %s76 = sphi 0, %s75
      %s90 = sphi 0, %s76
      %s94 = sphi 0, %s94
      %s96 = sphi 0, %s94
      %s97 = sphi 0, %s96
      %s111 = sphi 0, %s97
      %s115 = sphi 0, %s115
      %s117 = sphi 0, %s115
      %s118 = sphi 0, %s117
      %s132 = sphi 0, %s118
      %s136 = sphi 0, %s136
      %s138 = sphi 0, %s136
      %s139 = sphi 0, %s138
      %s153 = sphi 0, %s139
      %s157 = sphi 0, %s157
      %s159 = sphi 0, %s157
      %s160 = sphi 0, %s159
      %s174 = sphi 0, %s160
      %s178 = sphi 0, %s178
      %s180 = sphi 0, %s178
      %s181 = sphi 0, %s180
      %s195 = sphi 0, %s181
      %s199 = sphi 0, %s199
      %s201 = sphi 0, %s199
      %s202 = sphi 0, %s201
      %s216 = sphi 0, %s202
      %s222 = sphi 0, %s224
      %s225 = sphi 0, %s222
      %s226 = sphi 0, %s225
      %s242 = sphi 0, %s226
    $region4: #{tpu_custom_call.1} parent=1 // loop_header_branch
      %21 = sbr.rel (%p19) target = $region8
    $region5: #{tpu_custom_call.1} parent=1 // loop_body
      %s23 = ssub.s32 %s18, 1
      %s24 = ssub.s32 %s18, 2
      %s25 = sadd.s32 %s18, 1
      %s26 = ssub.s32 %s18, %s25
      %p27 = scmp.eq.s32.totalorder %s26, 0
      %s29 = sadd.s32 %s28, 1
      %s30 = scalar_select %p27, %s28, %s29
      %p33 = pneg %p27
      %p34 = scmp.eq.s32.totalorder %s18, 1
      %p35 = por %p33, %p34
      %p36 = scmp.ne.s32.totalorder %s28, %s31
      %p37 = scmp.eq.s32.totalorder %s18, 0
      %p38 = por %p36, %p37
      %p39 = scmp.ne.s32.totalorder %s28, %s31
      %p40 = scmp.eq.s32.totalorder %s23, 1
      %p41 = por %p39, %p40
      %p42 = scmp.ne.s32.totalorder %s31, %s32
      %p43 = scmp.eq.s32.totalorder %s23, 0
      %p44 = por %p42, %p43
      %p45 = scmp.ne.s32.totalorder %s31, %s32
      %p46 = scmp.eq.s32.totalorder %s24, 1
      %p47 = por %p45, %p46
      %p49 = scmp.ne.s32.totalorder %s32, %s48
      %p50 = scmp.eq.s32.totalorder %s24, 0
      %p51 = por %p49, %p50
      %s53 = sadd.s32 %s52, 1
      %p56 = scmp.eq.s32.totalorder %s18, 1
      %p57 = scmp.ne.s32.totalorder %s52, %s54
      %p58 = scmp.eq.s32.totalorder %s18, 0
      %p59 = por %p57, %p58
      %p60 = scmp.ne.s32.totalorder %s52, %s54
      %p61 = scmp.eq.s32.totalorder %s23, 1
      %p62 = por %p60, %p61
      %p63 = scmp.ne.s32.totalorder %s54, %s55
      %p64 = scmp.eq.s32.totalorder %s23, 0
      %p65 = por %p63, %p64
      %p66 = scmp.ne.s32.totalorder %s54, %s55
      %p67 = scmp.eq.s32.totalorder %s24, 1
      %p68 = por %p66, %p67
      %p70 = scmp.ne.s32.totalorder %s55, %s69
      %p71 = scmp.eq.s32.totalorder %s24, 0
      %p72 = por %p70, %p71
      %s74 = sadd.s32 %s73, 1
      %p77 = scmp.eq.s32.totalorder %s18, 1
      %p78 = scmp.ne.s32.totalorder %s73, %s75
      %p79 = scmp.eq.s32.totalorder %s18, 0
      %p80 = por %p78, %p79
      %p81 = scmp.ne.s32.totalorder %s73, %s75
      %p82 = scmp.eq.s32.totalorder %s23, 1
      %p83 = por %p81, %p82
      %p84 = scmp.ne.s32.totalorder %s75, %s76
      %p85 = scmp.eq.s32.totalorder %s23, 0
      %p86 = por %p84, %p85
      %p87 = scmp.ne.s32.totalorder %s75, %s76
      %p88 = scmp.eq.s32.totalorder %s24, 1
      %p89 = por %p87, %p88
      %p91 = scmp.ne.s32.totalorder %s76, %s90
      %p92 = scmp.eq.s32.totalorder %s24, 0
      %p93 = por %p91, %p92
      %s95 = sadd.s32 %s94, 1
      %p98 = scmp.eq.s32.totalorder %s18, 1
      %p99 = scmp.ne.s32.totalorder %s94, %s96
      %p100 = scmp.eq.s32.totalorder %s18, 0
      %p101 = por %p99, %p100
      %p102 = scmp.ne.s32.totalorder %s94, %s96
      %p103 = scmp.eq.s32.totalorder %s23, 1
      %p104 = por %p102, %p103
      %p105 = scmp.ne.s32.totalorder %s96, %s97
      %p106 = scmp.eq.s32.totalorder %s23, 0
      %p107 = por %p105, %p106
      %p108 = scmp.ne.s32.totalorder %s96, %s97
      %p109 = scmp.eq.s32.totalorder %s24, 1
      %p110 = por %p108, %p109
      %p112 = scmp.ne.s32.totalorder %s97, %s111
      %p113 = scmp.eq.s32.totalorder %s24, 0
      %p114 = por %p112, %p113
      %s116 = sadd.s32 %s115, 1
      %p119 = scmp.eq.s32.totalorder %s18, 1
      %p120 = scmp.ne.s32.totalorder %s115, %s117
      %p121 = scmp.eq.s32.totalorder %s18, 0
      %p122 = por %p120, %p121
      %p123 = scmp.ne.s32.totalorder %s115, %s117
      %p124 = scmp.eq.s32.totalorder %s23, 1
      %p125 = por %p123, %p124
      %p126 = scmp.ne.s32.totalorder %s117, %s118
      %p127 = scmp.eq.s32.totalorder %s23, 0
      %p128 = por %p126, %p127
      %p129 = scmp.ne.s32.totalorder %s117, %s118
      %p130 = scmp.eq.s32.totalorder %s24, 1
      %p131 = por %p129, %p130
      %p133 = scmp.ne.s32.totalorder %s118, %s132
      %p134 = scmp.eq.s32.totalorder %s24, 0
      %p135 = por %p133, %p134
      %s137 = sadd.s32 %s136, 1
      %p140 = scmp.eq.s32.totalorder %s18, 1
      %p141 = scmp.ne.s32.totalorder %s136, %s138
      %p142 = scmp.eq.s32.totalorder %s18, 0
      %p143 = por %p141, %p142
      %p144 = scmp.ne.s32.totalorder %s136, %s138
      %p145 = scmp.eq.s32.totalorder %s23, 1
      %p146 = por %p144, %p145
      %p147 = scmp.ne.s32.totalorder %s138, %s139
      %p148 = scmp.eq.s32.totalorder %s23, 0
      %p149 = por %p147, %p148
      %p150 = scmp.ne.s32.totalorder %s138, %s139
      %p151 = scmp.eq.s32.totalorder %s24, 1
      %p152 = por %p150, %p151
      %p154 = scmp.ne.s32.totalorder %s139, %s153
      %p155 = scmp.eq.s32.totalorder %s24, 0
      %p156 = por %p154, %p155
      %s158 = sadd.s32 %s157, 1
      %p161 = scmp.eq.s32.totalorder %s18, 1
      %p162 = scmp.ne.s32.totalorder %s157, %s159
      %p163 = scmp.eq.s32.totalorder %s18, 0
      %p164 = por %p162, %p163
      %p165 = scmp.ne.s32.totalorder %s157, %s159
      %p166 = scmp.eq.s32.totalorder %s23, 1
      %p167 = por %p165, %p166
      %p168 = scmp.ne.s32.totalorder %s159, %s160
      %p169 = scmp.eq.s32.totalorder %s23, 0
      %p170 = por %p168, %p169
      %p171 = scmp.ne.s32.totalorder %s159, %s160
      %p172 = scmp.eq.s32.totalorder %s24, 1
      %p173 = por %p171, %p172
      %p175 = scmp.ne.s32.totalorder %s160, %s174
      %p176 = scmp.eq.s32.totalorder %s24, 0
      %p177 = por %p175, %p176
      %s179 = sadd.s32 %s178, 1
      %p182 = scmp.eq.s32.totalorder %s18, 1
      %p183 = scmp.ne.s32.totalorder %s178, %s180
      %p184 = scmp.eq.s32.totalorder %s18, 0
      %p185 = por %p183, %p184
      %p186 = scmp.ne.s32.totalorder %s178, %s180
      %p187 = scmp.eq.s32.totalorder %s23, 1
      %p188 = por %p186, %p187
      %p189 = scmp.ne.s32.totalorder %s180, %s181
      %p190 = scmp.eq.s32.totalorder %s23, 0
      %p191 = por %p189, %p190
      %p192 = scmp.ne.s32.totalorder %s180, %s181
      %p193 = scmp.eq.s32.totalorder %s24, 1
      %p194 = por %p192, %p193
      %p196 = scmp.ne.s32.totalorder %s181, %s195
      %p197 = scmp.eq.s32.totalorder %s24, 0
      %p198 = por %p196, %p197
      %s200 = sadd.s32 %s199, 1
      %p203 = scmp.eq.s32.totalorder %s18, 1
      %p204 = scmp.ne.s32.totalorder %s199, %s201
      %p205 = scmp.eq.s32.totalorder %s18, 0
      %p206 = por %p204, %p205
      %p207 = scmp.ne.s32.totalorder %s199, %s201
      %p208 = scmp.eq.s32.totalorder %s23, 1
      %p209 = por %p207, %p208
      %p210 = scmp.ne.s32.totalorder %s201, %s202
      %p211 = scmp.eq.s32.totalorder %s23, 0
      %p212 = por %p210, %p211
      %p213 = scmp.ne.s32.totalorder %s201, %s202
      %p214 = scmp.eq.s32.totalorder %s24, 1
      %p215 = por %p213, %p214
      %p217 = scmp.ne.s32.totalorder %s202, %s216
      %p218 = scmp.eq.s32.totalorder %s24, 0
      %p219 = por %p217, %p218
      %s220 = ssub.s32 %s18, %s25
      %p221 = scmp.eq.s32.totalorder %s220, 0
      %s223 = sadd.s32 %s222, 1
      %s224 = scalar_select %p221, %s222, %s223
      %p227 = pneg %p221
      %p228 = scmp.eq.s32.totalorder %s18, 1
      %p229 = por %p227, %p228
      %p230 = scmp.ne.s32.totalorder %s222, %s225
      %p231 = scmp.eq.s32.totalorder %s18, 0
      %p232 = por %p230, %p231
      %p233 = scmp.ne.s32.totalorder %s222, %s225
      %p234 = scmp.eq.s32.totalorder %s23, 1
      %p235 = por %p233, %p234
      %p236 = scmp.ne.s32.totalorder %s225, %s226
      %p237 = scmp.eq.s32.totalorder %s23, 0
      %p238 = por %p236, %p237
      %p239 = scmp.ne.s32.totalorder %s225, %s226
      %p240 = scmp.eq.s32.totalorder %s24, 1
      %p241 = por %p239, %p240
      %p243 = scmp.ne.s32.totalorder %s226, %s242
      %p244 = scmp.eq.s32.totalorder %s24, 0
      %p245 = por %p243, %p244
      %p246 = scmp.le.s32.totalorder 1, %s18
      %p247 = scmp.lt.s32.totalorder %s18, 3
      %p248 = pnand %p246, %p247
      %p249 = pneg %p248
      // Predicated region
      $region9: #{tpu_custom_call.1} parent=5 // pred_check
        _
      $region10: #{tpu_custom_call.1} parent=5 // pred_check_branch
        %251 = sbr.rel (%p248) target = $region12
      $region11: #{tpu_custom_call.1} parent=5 // pred_region
        %s252 = ssub.s32 %s18, 1
        // Predicated region
        $region13: #{tpu_custom_call.1} parent=11 // pred_check
          %p253 = pneg %p65
        $region14: #{tpu_custom_call.1} parent=11 // pred_check_branch
          %255 = sbr.rel (%p253) target = $region16
        $region15: #{tpu_custom_call.1} parent=11 // pred_region
          _
        $region16: #{tpu_custom_call.1} parent=11 // pred_fallthru
          _
        // Predicated region
        $region17: #{tpu_custom_call.1} parent=11 // pred_check
          %p256 = pneg %p86
        $region18: #{tpu_custom_call.1} parent=11 // pred_check_branch
          %258 = sbr.rel (%p256) target = $region20
        $region19: #{tpu_custom_call.1} parent=11 // pred_region
          _
        $region20: #{tpu_custom_call.1} parent=11 // pred_fallthru
          _
        // Predicated region
        $region21: #{tpu_custom_call.1} parent=11 // pred_check
          %p259 = pneg %p107
        $region22: #{tpu_custom_call.1} parent=11 // pred_check_branch
          %261 = sbr.rel (%p259) target = $region24
        $region23: #{tpu_custom_call.1} parent=11 // pred_region
          _
        $region24: #{tpu_custom_call.1} parent=11 // pred_fallthru
          _
        // Predicated region
        $region25: #{tpu_custom_call.1} parent=11 // pred_check
          %p262 = pneg %p128
        $region26: #{tpu_custom_call.1} parent=11 // pred_check_branch
          %264 = sbr.rel (%p262) target = $region28
        $region27: #{tpu_custom_call.1} parent=11 // pred_region
          _
        $region28: #{tpu_custom_call.1} parent=11 // pred_fallthru
          _
        // Predicated region
        $region29: #{tpu_custom_call.1} parent=11 // pred_check
          %p265 = pneg %p149
        $region30: #{tpu_custom_call.1} parent=11 // pred_check_branch
          %267 = sbr.rel (%p265) target = $region32
        $region31: #{tpu_custom_call.1} parent=11 // pred_region
          _
        $region32: #{tpu_custom_call.1} parent=11 // pred_fallthru
          _
        // Predicated region
        $region33: #{tpu_custom_call.1} parent=11 // pred_check
          %p268 = pneg %p170
        $region34: #{tpu_custom_call.1} parent=11 // pred_check_branch
          %270 = sbr.rel (%p268) target = $region36
        $region35: #{tpu_custom_call.1} parent=11 // pred_region
          _
        $region36: #{tpu_custom_call.1} parent=11 // pred_fallthru
          _
        // Predicated region
        $region37: #{tpu_custom_call.1} parent=11 // pred_check
          %p271 = pneg %p191
        $region38: #{tpu_custom_call.1} parent=11 // pred_check_branch
          %273 = sbr.rel (%p271) target = $region40
        $region39: #{tpu_custom_call.1} parent=11 // pred_region
          _
        $region40: #{tpu_custom_call.1} parent=11 // pred_fallthru
          _
        // Predicated region
        $region41: #{tpu_custom_call.1} parent=11 // pred_check
          %p274 = pneg %p212
        $region42: #{tpu_custom_call.1} parent=11 // pred_check_branch
          %276 = sbr.rel (%p274) target = $region44
        $region43: #{tpu_custom_call.1} parent=11 // pred_region
          _
        $region44: #{tpu_custom_call.1} parent=11 // pred_fallthru
          _
      $region12: #{tpu_custom_call.1} parent=5 // pred_fallthru
        _
      %p277 = scmp.lt.s32.totalorder %s18, 2
      // Predicated region
      $region45: #{tpu_custom_call.1} parent=5 // pred_check
        %p278 = pneg %p277
      $region46: #{tpu_custom_call.1} parent=5 // pred_check_branch
        %280 = sbr.rel (%p278) target = $region48
      $region47: #{tpu_custom_call.1} parent=5 // pred_region
        // Predicated region
        $region49: #{tpu_custom_call.1} parent=47 // pred_check
          %p281 = pneg %p38
        $region50: #{tpu_custom_call.1} parent=47 // pred_check_branch
          %283 = sbr.rel (%p281) target = $region52
        $region51: #{tpu_custom_call.1} parent=47 // pred_region
          %s284 = smul.u32 2, %s18
          %p285 = scmp.lt.s32.totalorder %s284, 3
          %s286 = scalar_select %p285, %s284, 3
          %s287 = smul.addr %s286, 7
          %s288 = smul.addr %s287, 8
          %s289 = scalar_lea.vmem %s0, %s288
          %s290 = smul.u32 2, %s18
        $region52: #{tpu_custom_call.1} parent=47 // pred_fallthru
          _
      $region48: #{tpu_custom_call.1} parent=5 // pred_fallthru
        _
      %p291 = scmp.le.s32.totalorder 1, %s18
      %p292 = scmp.lt.s32.totalorder %s18, 3
      %p293 = pnand %p291, %p292
      %p294 = pneg %p293
      // Predicated region
      $region53: #{tpu_custom_call.1} parent=5 // pred_check
        _
      $region54: #{tpu_custom_call.1} parent=5 // pred_check_branch
        %296 = sbr.rel (%p293) target = $region56
      $region55: #{tpu_custom_call.1} parent=5 // pred_region
        %s297 = ssub.s32 %s18, 1
        %s298 = smul.u32 2, %s23
        %p299 = scmp.lt.s32.totalorder %s298, 3
        %s300 = scalar_select %p299, %s298, 3
        %s301 = smul.addr %s300, 7
        %s302 = smul.addr %s301, 8
        %s303 = scalar_lea.vmem %s0, %s302
        %p304 = pneg %p44
        %p305 = pneg %p41
        %p306 = pneg %p65
        %p307 = pneg %p62
        %p308 = pneg %p86
        %p309 = pneg %p83
        %p310 = pneg %p107
        %p311 = pneg %p104
        %p312 = pneg %p128
        %p313 = pneg %p125
        %p314 = pneg %p149
        %p315 = pneg %p146
        %p316 = pneg %p170
        %p317 = pneg %p167
        %p318 = pneg %p191
        %p319 = pneg %p188
        %p320 = pneg %p212
        %p321 = pneg %p209
        %p322 = pneg %p238
        %p323 = pneg %p235
        %s324 = sand.u32 %s225, 1
        %s325 = scalar_lea.sflag [#allocation3], %s324
        %s326 = sand.u32 %s225, 1
        %s327 = smul.addr %s326, 112
        %s328 = scalar_lea.vmem [#allocation2], %s327
        %s329 = smul.u32 2, %s23
        %p330 = scmp.lt.s32.totalorder %s329, 3
        %s331 = scalar_select %p330, %s329, 3
        %s332 = smul.addr %s331, 7
        %s333 = smul.addr %s332, 8
        %s334 = scalar_lea.vmem %s0, %s333
        %s335 = smul.u32 2, %s23
        %s336 = smul.u32 2, %s23
        %v338 = vld [vmem:[%s334] sm:$0xff]
        %v339 = vld [vmem:[%s334 + $0x8] sm:$0xff]
        %v340 = vld [vmem:[%s334 + $0x10] sm:$0xff]
        %v341 = vld [vmem:[%s334 + $0x18] sm:$0xff]
        %v342 = vld [vmem:[%s334 + $0x20] sm:$0xff]
        %v343 = vld [vmem:[%s334 + $0x28] sm:$0xff]
        %v344 = vld [vmem:[%s334 + $0x30] sm:$0xff]
        %v345 = vld [vmem:[%s334 + $0x38] sm:$0xff]
        %v346 = vld [vmem:[%s334 + $0x40] sm:$0xff]
        %v347 = vld [vmem:[%s334 + $0x48] sm:$0xff]
        %v348 = vld [vmem:[%s334 + $0x50] sm:$0xff]
        %v349 = vld [vmem:[%s334 + $0x58] sm:$0xff]
        %v350 = vld [vmem:[%s334 + $0x60] sm:$0xff]
        %v351 = vld [vmem:[%s334 + $0x68] sm:$0xff]
        %v352 = vpack.c.bf16 %v345, %v338
        %v353 = vpack.c.bf16 %v346, %v339
        %v354 = vpack.c.bf16 %v347, %v340
        %v355 = vpack.c.bf16 %v348, %v341
        %v356 = vpack.c.bf16 %v349, %v342
        %v357 = vpack.c.bf16 %v350, %v343
        %v358 = vpack.c.bf16 %v351, %v344
        %v359 = vld [vmem:[%s1] sm:$0xf]
        %v360 = vld [vmem:[%s1 + $0x4] sm:$0xf]
        %v361 = vld [vmem:[%s1 + $0x8] sm:$0xf]
        %v362 = vld [vmem:[%s1 + $0xc] sm:$0xf]
        %v363 = vld [vmem:[%s1 + $0x10] sm:$0xf]
        %v364 = vld [vmem:[%s1 + $0x14] sm:$0xf]
        %v365 = vld [vmem:[%s1 + $0x18] sm:$0xf]
        %v366 = vld [vmem:[%s1 + $0x1c] sm:$0xf]
        %v367 = vld [vmem:[%s1 + $0x20] sm:$0xf]
        %v368 = vld [vmem:[%s1 + $0x24] sm:$0xf]
        %v369 = vld [vmem:[%s1 + $0x28] sm:$0xf]
        %v370 = vld [vmem:[%s1 + $0x2c] sm:$0xf]
        %v371 = vld [vmem:[%s1 + $0x30] sm:$0xf]
        %v372 = vld [vmem:[%s1 + $0x34] sm:$0xf]
        %v373 = vld [vmem:[%s1 + $0x38] sm:$0xf]
        %v374 = vld [vmem:[%s1 + $0x3c] sm:$0xf]
        %v375 = vld [vmem:[%s1 + $0x40] sm:$0xf]
        %v376 = vld [vmem:[%s1 + $0x44] sm:$0xf]
        %v377 = vld [vmem:[%s1 + $0x48] sm:$0xf]
        %v378 = vld [vmem:[%s1 + $0x4c] sm:$0xf]
        %v379 = vld [vmem:[%s1 + $0x50] sm:$0xf]
        %v380 = vld [vmem:[%s1 + $0x54] sm:$0xf]
        %v381 = vld [vmem:[%s1 + $0x58] sm:$0xf]
        %v382 = vld [vmem:[%s1 + $0x5c] sm:$0xf]
        %v383 = vld [vmem:[%s1 + $0x60] sm:$0xf]
        %v384 = vld [vmem:[%s1 + $0x64] sm:$0xf]
        %v385 = vld [vmem:[%s1 + $0x68] sm:$0xf]
        %v386 = vld [vmem:[%s1 + $0x6c] sm:$0xf]
        %v387 = vld [vmem:[%s1 + $0x70] sm:$0xf]
        %v388 = vld [vmem:[%s1 + $0x74] sm:$0xf]
        %v389 = vld [vmem:[%s1 + $0x78] sm:$0xf]
        %v390 = vld [vmem:[%s1 + $0x7c] sm:$0xf]
        %v391 = vld [vmem:[%s1 + $0x80] sm:$0xf]
        %v392 = vld [vmem:[%s1 + $0x84] sm:$0xf]
        %v393 = vld [vmem:[%s1 + $0x88] sm:$0xf]
        %v394 = vld [vmem:[%s1 + $0x8c] sm:$0xf]
        %v395 = vld [vmem:[%s1 + $0x90] sm:$0xf]
        %v396 = vld [vmem:[%s1 + $0x94] sm:$0xf]
        %v397 = vld [vmem:[%s1 + $0x98] sm:$0xf]
        %v398 = vld [vmem:[%s1 + $0x9c] sm:$0xf]
        %v399 = vld [vmem:[%s1 + $0xa0] sm:$0xf]
        %v400 = vld [vmem:[%s1 + $0xa4] sm:$0xf]
        %v401 = vld [vmem:[%s1 + $0xa8] sm:$0xf]
        %v402 = vld [vmem:[%s1 + $0xac] sm:$0xf]
        %v403 = vld [vmem:[%s1 + $0xb0] sm:$0xf]
        %v404 = vld [vmem:[%s1 + $0xb4] sm:$0xf]
        %v405 = vld [vmem:[%s1 + $0xb8] sm:$0xf]
        %v406 = vld [vmem:[%s1 + $0xbc] sm:$0xf]
        %v407 = vld [vmem:[%s1 + $0xc0] sm:$0xf]
        %v408 = vld [vmem:[%s1 + $0xc4] sm:$0xf]
        %v409 = vld [vmem:[%s1 + $0xc8] sm:$0xf]
        %v410 = vld [vmem:[%s1 + $0xcc] sm:$0xf]
        %v411 = vld [vmem:[%s1 + $0xd0] sm:$0xf]
        %v412 = vld [vmem:[%s1 + $0xd4] sm:$0xf]
        %v413 = vld [vmem:[%s1 + $0xd8] sm:$0xf]
        %v414 = vld [vmem:[%s1 + $0xdc] sm:$0xf]
        %v415 = vld [vmem:[%s1 + $0xe0] sm:$0xf]
        %v416 = vld [vmem:[%s1 + $0xe4] sm:$0xf]
        %v417 = vld [vmem:[%s1 + $0xe8] sm:$0xf]
        %v418 = vld [vmem:[%s1 + $0xec] sm:$0xf]
        %v419 = vld [vmem:[%s1 + $0xf0] sm:$0xf]
        %v420 = vld [vmem:[%s1 + $0xf4] sm:$0xf]
        %v421 = vld [vmem:[%s1 + $0xf8] sm:$0xf]
        %v422 = vld [vmem:[%s1 + $0xfc] sm:$0xf]
        %v423 = vld [vmem:[%s1 + $0x100] sm:$0xf]
        %v424 = vld [vmem:[%s1 + $0x104] sm:$0xf]
        %v425 = vld [vmem:[%s1 + $0x108] sm:$0xf]
        %v426 = vld [vmem:[%s1 + $0x10c] sm:$0xf]
        %v427 = vld [vmem:[%s1 + $0x110] sm:$0xf]
        %v428 = vld [vmem:[%s1 + $0x114] sm:$0xf]
        %v429 = vld [vmem:[%s1 + $0x118] sm:$0xf]
        %v430 = vld [vmem:[%s1 + $0x11c] sm:$0xf]
        %v431 = vld [vmem:[%s1 + $0x120] sm:$0xf]
        %v432 = vld [vmem:[%s1 + $0x124] sm:$0xf]
        %v433 = vld [vmem:[%s1 + $0x128] sm:$0xf]
        %v434 = vld [vmem:[%s1 + $0x12c] sm:$0xf]
        %v435 = vld [vmem:[%s1 + $0x130] sm:$0xf]
        %v436 = vld [vmem:[%s1 + $0x134] sm:$0xf]
        %v437 = vld [vmem:[%s1 + $0x138] sm:$0xf]
        %v438 = vld [vmem:[%s1 + $0x13c] sm:$0xf]
        %v439 = vld [vmem:[%s1 + $0x140] sm:$0xf]
        %v440 = vld [vmem:[%s1 + $0x144] sm:$0xf]
        %v441 = vld [vmem:[%s1 + $0x148] sm:$0xf]
        %v442 = vld [vmem:[%s1 + $0x14c] sm:$0xf]
        %v443 = vld [vmem:[%s1 + $0x150] sm:$0xf]
        %v444 = vld [vmem:[%s1 + $0x154] sm:$0xf]
        %v445 = vld [vmem:[%s1 + $0x158] sm:$0xf]
        %v446 = vld [vmem:[%s1 + $0x15c] sm:$0xf]
        %v447 = vld [vmem:[%s1 + $0x160] sm:$0xf]
        %v448 = vld [vmem:[%s1 + $0x164] sm:$0xf]
        %v449 = vld [vmem:[%s1 + $0x168] sm:$0xf]
        %v450 = vld [vmem:[%s1 + $0x16c] sm:$0xf]
        %v451 = vld [vmem:[%s1 + $0x170] sm:$0xf]
        %v452 = vld [vmem:[%s1 + $0x174] sm:$0xf]
        %v453 = vld [vmem:[%s1 + $0x178] sm:$0xf]
        %v454 = vld [vmem:[%s1 + $0x17c] sm:$0xf]
        %v455 = vld [vmem:[%s1 + $0x180] sm:$0xf]
        %v456 = vld [vmem:[%s1 + $0x184] sm:$0xf]
        %v457 = vld [vmem:[%s2] sm:$0x1]
        %v459 = vperm.slane %v457, 0
        %v559 = vunpack.c.l.b16 %v359
        %v560 = vunpack.c.l.b16 %v360
        %v561 = vunpack.c.l.b16 %v361
        %v562 = vunpack.c.l.b16 %v362
        %v563 = vunpack.c.l.b16 %v363
        %v564 = vunpack.c.l.b16 %v364
        %v565 = vunpack.c.l.b16 %v365
        %v566 = vunpack.c.l.b16 %v366
        %v567 = vunpack.c.l.b16 %v367
        %v568 = vunpack.c.l.b16 %v368
        %v569 = vunpack.c.l.b16 %v369
        %v570 = vunpack.c.l.b16 %v370
        %v571 = vunpack.c.l.b16 %v371
        %v572 = vunpack.c.l.b16 %v372
        %v573 = vunpack.c.l.b16 %v373
        %v574 = vunpack.c.l.b16 %v374
        %v575 = vunpack.c.l.b16 %v375
        %v576 = vunpack.c.l.b16 %v376
        %v577 = vunpack.c.l.b16 %v377
        %v578 = vunpack.c.l.b16 %v378
        %v579 = vunpack.c.l.b16 %v379
        %v580 = vunpack.c.l.b16 %v380
        %v581 = vunpack.c.l.b16 %v381
        %v582 = vunpack.c.l.b16 %v382
        %v583 = vunpack.c.l.b16 %v383
        %v584 = vunpack.c.l.b16 %v384
        %v585 = vunpack.c.l.b16 %v385
        %v586 = vunpack.c.l.b16 %v386
        %v587 = vunpack.c.l.b16 %v387
        %v588 = vunpack.c.l.b16 %v388
        %v589 = vunpack.c.l.b16 %v389
        %v590 = vunpack.c.l.b16 %v390
        %v591 = vunpack.c.l.b16 %v391
        %v592 = vunpack.c.l.b16 %v392
        %v593 = vunpack.c.l.b16 %v393
        %v594 = vunpack.c.l.b16 %v394
        %v595 = vunpack.c.l.b16 %v395
        %v596 = vunpack.c.l.b16 %v396
        %v597 = vunpack.c.l.b16 %v397
        %v598 = vunpack.c.l.b16 %v398
        %v599 = vunpack.c.l.b16 %v399
        %v600 = vunpack.c.l.b16 %v400
        %v601 = vunpack.c.l.b16 %v401
        %v602 = vunpack.c.l.b16 %v402
        %v603 = vunpack.c.l.b16 %v403
        %v604 = vunpack.c.l.b16 %v404
        %v605 = vunpack.c.l.b16 %v405
        %v606 = vunpack.c.l.b16 %v406
        %v607 = vunpack.c.l.b16 %v407
        %v608 = vunpack.c.l.b16 %v408
        %v609 = vunpack.c.l.b16 %v409
        %v610 = vunpack.c.l.b16 %v410
        %v611 = vunpack.c.l.b16 %v411
        %v612 = vunpack.c.l.b16 %v412
        %v613 = vunpack.c.l.b16 %v413
        %v614 = vunpack.c.l.b16 %v414
        %v615 = vunpack.c.l.b16 %v415
        %v616 = vunpack.c.l.b16 %v416
        %v617 = vunpack.c.l.b16 %v417
        %v618 = vunpack.c.l.b16 %v418
        %v619 = vunpack.c.l.b16 %v419
        %v620 = vunpack.c.l.b16 %v420
        %v621 = vunpack.c.l.b16 %v421
        %v622 = vunpack.c.l.b16 %v422
        %v623 = vunpack.c.l.b16 %v423
        %v624 = vunpack.c.l.b16 %v424
        %v625 = vunpack.c.l.b16 %v425
        %v626 = vunpack.c.l.b16 %v426
        %v627 = vunpack.c.l.b16 %v427
        %v628 = vunpack.c.l.b16 %v428
        %v629 = vunpack.c.l.b16 %v429
        %v630 = vunpack.c.l.b16 %v430
        %v631 = vunpack.c.l.b16 %v431
        %v632 = vunpack.c.l.b16 %v432
        %v633 = vunpack.c.l.b16 %v433
        %v634 = vunpack.c.l.b16 %v434
        %v635 = vunpack.c.l.b16 %v435
        %v636 = vunpack.c.l.b16 %v436
        %v637 = vunpack.c.l.b16 %v437
        %v638 = vunpack.c.l.b16 %v438
        %v639 = vunpack.c.l.b16 %v439
        %v640 = vunpack.c.l.b16 %v440
        %v641 = vunpack.c.l.b16 %v441
        %v642 = vunpack.c.l.b16 %v442
        %v643 = vunpack.c.l.b16 %v443
        %v644 = vunpack.c.l.b16 %v444
        %v645 = vunpack.c.l.b16 %v445
        %v646 = vunpack.c.l.b16 %v446
        %v647 = vunpack.c.l.b16 %v447
        %v648 = vunpack.c.l.b16 %v448
        %v649 = vunpack.c.l.b16 %v449
        %v650 = vunpack.c.l.b16 %v450
        %v651 = vunpack.c.l.b16 %v451
        %v652 = vunpack.c.l.b16 %v452
        %v653 = vunpack.c.l.b16 %v453
        %v654 = vunpack.c.l.b16 %v454
        %v655 = vunpack.c.l.b16 %v455
        %v656 = vunpack.c.l.b16 %v456
        %v657 = vpack.c.b16 %v560, %v559
        %v658 = vpack.c.b16 %v562, %v561
        %v659 = vpack.c.b16 %v564, %v563
        %v660 = vpack.c.b16 %v566, %v565
        %v661 = vpack.c.b16 %v568, %v567
        %v662 = vpack.c.b16 %v570, %v569
        %v663 = vpack.c.b16 %v572, %v571
        %v664 = vpack.c.b16 %v574, %v573
        %v665 = vpack.c.b16 %v576, %v575
        %v666 = vpack.c.b16 %v578, %v577
        %v667 = vpack.c.b16 %v580, %v579
        %v668 = vpack.c.b16 %v582, %v581
        %v669 = vpack.c.b16 %v584, %v583
        %v670 = vpack.c.b16 %v586, %v585
        %v671 = vpack.c.b16 %v588, %v587
        %v672 = vpack.c.b16 %v590, %v589
        %v673 = vpack.c.b16 %v592, %v591
        %v674 = vpack.c.b16 %v594, %v593
        %v675 = vpack.c.b16 %v596, %v595
        %v676 = vpack.c.b16 %v598, %v597
        %v677 = vpack.c.b16 %v600, %v599
        %v678 = vpack.c.b16 %v602, %v601
        %v679 = vpack.c.b16 %v604, %v603
        %v680 = vpack.c.b16 %v606, %v605
        %v681 = vpack.c.b16 %v608, %v607
        %v682 = vpack.c.b16 %v610, %v609
        %v683 = vpack.c.b16 %v612, %v611
        %v684 = vpack.c.b16 %v614, %v613
        %v685 = vpack.c.b16 %v616, %v615
        %v686 = vpack.c.b16 %v618, %v617
        %v687 = vpack.c.b16 %v620, %v619
        %v688 = vpack.c.b16 %v622, %v621
        %v689 = vpack.c.b16 %v624, %v623
        %v690 = vpack.c.b16 %v626, %v625
        %v691 = vpack.c.b16 %v628, %v627
        %v692 = vpack.c.b16 %v630, %v629
        %v693 = vpack.c.b16 %v632, %v631
        %v694 = vpack.c.b16 %v634, %v633
        %v695 = vpack.c.b16 %v636, %v635
        %v696 = vpack.c.b16 %v638, %v637
        %v697 = vpack.c.b16 %v640, %v639
        %v698 = vpack.c.b16 %v642, %v641
        %v699 = vpack.c.b16 %v644, %v643
        %v700 = vpack.c.b16 %v646, %v645
        %v701 = vpack.c.b16 %v648, %v647
        %v702 = vpack.c.b16 %v650, %v649
        %v703 = vpack.c.b16 %v652, %v651
        %v704 = vpack.c.b16 %v654, %v653
        %v705 = vpack.c.b16 %v656, %v655
        %vm755 = vcmask 130048
        %v757 = vsel %vm755, %v358, 0
        %759 = vmatpush.bf16.msra.mxu0 %v664
        %760 = vmatpush.bf16.msra.mxu0 %v663
        %761 = vmatpush.bf16.msra.mxu0 %v662
        %762 = vmatpush.bf16.msra.mxu0 %v661
        %763 = vmatpush.bf16.msra.mxu0 %v660
        %764 = vmatpush.bf16.msra.mxu0 %v659
        %765 = vmatpush.bf16.msra.mxu0 %v658
        %766 = vmatpush.bf16.msra.mxu0 %v657
        %767 = vmatmul.bf16.gmra.mxu0 %v352
        %v768 = vpop.f32.mrf.mxu0
        %v769 = vadd.f32 %v459, %v768
        %v770 = vpop.f32.mrf.mxu0
        %v771 = vadd.f32 %v459, %v770
        %772 = vdwg.mxu0
        %773 = vmatpush.bf16.msra.mxu0 %v672
        %774 = vmatpush.bf16.msra.mxu0 %v671
        %775 = vmatpush.bf16.msra.mxu0 %v670
        %776 = vmatpush.bf16.msra.mxu0 %v669
        %777 = vmatpush.bf16.msra.mxu0 %v668
        %778 = vmatpush.bf16.msra.mxu0 %v667
        %779 = vmatpush.bf16.msra.mxu0 %v666
        %780 = vmatpush.bf16.msra.mxu0 %v665
        %781 = vmatmul.bf16.gmra.mxu0 %v353
        %v782 = vpop.f32.mrf.mxu0
        %v783 = vadd.f32 %v769, %v782
        %v784 = vpop.f32.mrf.mxu0
        %v785 = vadd.f32 %v771, %v784
        %786 = vdwg.mxu0
        %787 = vmatpush.bf16.msra.mxu0 %v680
        %788 = vmatpush.bf16.msra.mxu0 %v679
        %789 = vmatpush.bf16.msra.mxu0 %v678
        %790 = vmatpush.bf16.msra.mxu0 %v677
        %791 = vmatpush.bf16.msra.mxu0 %v676
        %792 = vmatpush.bf16.msra.mxu0 %v675
        %793 = vmatpush.bf16.msra.mxu0 %v674
        %794 = vmatpush.bf16.msra.mxu0 %v673
        %795 = vmatmul.bf16.gmra.mxu0 %v354
        %v796 = vpop.f32.mrf.mxu0
        %v797 = vadd.f32 %v783, %v796
        %v798 = vpop.f32.mrf.mxu0
        %v799 = vadd.f32 %v785, %v798
        %800 = vdwg.mxu0
        %801 = vmatpush.bf16.msra.mxu0 %v688
        %802 = vmatpush.bf16.msra.mxu0 %v687
        %803 = vmatpush.bf16.msra.mxu0 %v686
        %804 = vmatpush.bf16.msra.mxu0 %v685
        %805 = vmatpush.bf16.msra.mxu0 %v684
        %806 = vmatpush.bf16.msra.mxu0 %v683
        %807 = vmatpush.bf16.msra.mxu0 %v682
        %808 = vmatpush.bf16.msra.mxu0 %v681
        %809 = vmatmul.bf16.gmra.mxu0 %v355
        %v810 = vpop.f32.mrf.mxu0
        %v811 = vadd.f32 %v797, %v810
        %v812 = vpop.f32.mrf.mxu0
        %v813 = vadd.f32 %v799, %v812
        %814 = vdwg.mxu0
        %815 = vmatpush.bf16.msra.mxu0 %v696
        %816 = vmatpush.bf16.msra.mxu0 %v695
        %817 = vmatpush.bf16.msra.mxu0 %v694
        %818 = vmatpush.bf16.msra.mxu0 %v693
        %819 = vmatpush.bf16.msra.mxu0 %v692
        %820 = vmatpush.bf16.msra.mxu0 %v691
        %821 = vmatpush.bf16.msra.mxu0 %v690
        %822 = vmatpush.bf16.msra.mxu0 %v689
        %823 = vmatmul.bf16.gmra.mxu0 %v356
        %v824 = vpop.f32.mrf.mxu0
        %v825 = vadd.f32 %v811, %v824
        %v826 = vpop.f32.mrf.mxu0
        %v827 = vadd.f32 %v813, %v826
        %828 = vdwg.mxu0
        %829 = vmatpush.bf16.msra.mxu0 %v704
        %830 = vmatpush.bf16.msra.mxu0 %v703
        %831 = vmatpush.bf16.msra.mxu0 %v702
        %832 = vmatpush.bf16.msra.mxu0 %v701
        %833 = vmatpush.bf16.msra.mxu0 %v700
        %834 = vmatpush.bf16.msra.mxu0 %v699
        %835 = vmatpush.bf16.msra.mxu0 %v698
        %836 = vmatpush.bf16.msra.mxu0 %v697
        %837 = vmatmul.bf16.gmra.mxu0 %v357
        %v838 = vpop.f32.mrf.mxu0
        %v839 = vadd.f32 %v825, %v838
        %v840 = vpop.f32.mrf.mxu0
        %v841 = vadd.f32 %v827, %v840
        %842 = vdwg.mxu0
        %843 = vmatpush.bf16.msra.mxu0 0
        %844 = vmatpush.bf16.msra.mxu0 0
        %845 = vmatpush.bf16.msra.mxu0 0
        %846 = vmatpush.bf16.msra.mxu0 0
        %847 = vmatpush.bf16.msra.mxu0 0
        %848 = vmatpush.bf16.msra.mxu0 0
        %849 = vmatpush.bf16.msra.mxu0 0
        %850 = vmatpush.bf16.msra.mxu0 %v705
        %851 = vmatmul.bf16.gmra.mxu0 %v757
        %v852 = vpop.f32.mrf.mxu0
        %v853 = vadd.f32 %v839, %v852
        %v854 = vpop.f32.mrf.mxu0
        %v855 = vadd.f32 %v841, %v854
        %856 = vdwg.mxu0
        %v857 = vmax.f32 %v853, 0.0
        %v858 = vmax.f32 %v855, 0.0
        %v859 = vpack.c.bf16 %v858, %v857
        %v860 = vld [vmem:[%s3] sm:$0xf]
        %v861 = vld [vmem:[%s3 + $0x4] sm:$0xf]
        %v862 = vld [vmem:[%s3 + $0x8] sm:$0xf]
        %v863 = vld [vmem:[%s3 + $0xc] sm:$0xf]
        %v864 = vld [vmem:[%s3 + $0x10] sm:$0xf]
        %v865 = vld [vmem:[%s3 + $0x14] sm:$0xf]
        %v866 = vld [vmem:[%s3 + $0x18] sm:$0xf]
        %v867 = vld [vmem:[%s3 + $0x1c] sm:$0xf]
        %v868 = vld [vmem:[%s3 + $0x20] sm:$0xf]
        %v869 = vld [vmem:[%s3 + $0x24] sm:$0xf]
        %v870 = vld [vmem:[%s3 + $0x28] sm:$0xf]
        %v871 = vld [vmem:[%s3 + $0x2c] sm:$0xf]
        %v872 = vld [vmem:[%s3 + $0x30] sm:$0xf]
        %v873 = vld [vmem:[%s3 + $0x34] sm:$0xf]
        %v874 = vld [vmem:[%s3 + $0x38] sm:$0xf]
        %v875 = vld [vmem:[%s3 + $0x3c] sm:$0xf]
        %v876 = vld [vmem:[%s4] sm:$0x1]
        %v878 = vperm.slane %v876, 0
        %v896 = vunpack.c.l.b16 %v860
        %v897 = vunpack.c.l.b16 %v861
        %v898 = vunpack.c.l.b16 %v862
        %v899 = vunpack.c.l.b16 %v863
        %v900 = vunpack.c.l.b16 %v864
        %v901 = vunpack.c.l.b16 %v865
        %v902 = vunpack.c.l.b16 %v866
        %v903 = vunpack.c.l.b16 %v867
        %v904 = vunpack.c.l.b16 %v868
        %v905 = vunpack.c.l.b16 %v869
        %v906 = vunpack.c.l.b16 %v870
        %v907 = vunpack.c.l.b16 %v871
        %v908 = vunpack.c.l.b16 %v872
        %v909 = vunpack.c.l.b16 %v873
        %v910 = vunpack.c.l.b16 %v874
        %v911 = vunpack.c.l.b16 %v875
        %v912 = vpack.c.b16 %v897, %v896
        %v913 = vpack.c.b16 %v899, %v898
        %v914 = vpack.c.b16 %v901, %v900
        %v915 = vpack.c.b16 %v903, %v902
        %v916 = vpack.c.b16 %v905, %v904
        %v917 = vpack.c.b16 %v907, %v906
        %v918 = vpack.c.b16 %v909, %v908
        %v919 = vpack.c.b16 %v911, %v910
        %928 = vmatpush.bf16.msra.mxu0 %v919
        %929 = vmatpush.bf16.msra.mxu0 %v918
        %930 = vmatpush.bf16.msra.mxu0 %v917
        %931 = vmatpush.bf16.msra.mxu0 %v916
        %932 = vmatpush.bf16.msra.mxu0 %v915
        %933 = vmatpush.bf16.msra.mxu0 %v914
        %934 = vmatpush.bf16.msra.mxu0 %v913
        %935 = vmatpush.bf16.msra.mxu0 %v912
        %936 = vmatmul.bf16.gmra.mxu0 %v859
        %v937 = vpop.f32.mrf.mxu0
        %v938 = vadd.f32 %v878, %v937
        %v939 = vpop.f32.mrf.mxu0
        %v940 = vadd.f32 %v878, %v939
        %941 = vdwg.mxu0
        %v942 = vmax.f32 %v938, 0.0
        %v943 = vmax.f32 %v940, 0.0
        %v944 = vpack.c.bf16 %v943, %v942
        %v945 = vld [vmem:[%s5] sm:$0xf]
        %v946 = vld [vmem:[%s5 + $0x4] sm:$0xf]
        %v947 = vld [vmem:[%s5 + $0x8] sm:$0xf]
        %v948 = vld [vmem:[%s5 + $0xc] sm:$0xf]
        %v949 = vld [vmem:[%s6] sm:$0x1]
        %v951 = vperm.slane %v949, 0
        %v957 = vunpack.c.l.b16 %v945
        %v958 = vunpack.c.l.b16 %v946
        %v959 = vunpack.c.l.b16 %v947
        %v960 = vunpack.c.l.b16 %v948
        %v961 = vpack.c.b16 %v958, %v957
        %v962 = vpack.c.b16 %v960, %v959
        %vm965 = vcmask 261120
        %v967 = vsel %vm965, %v944, 0
        %969 = vmatpush.bf16.msra.mxu0 0
        %970 = vmatpush.bf16.msra.mxu0 0
        %971 = vmatpush.bf16.msra.mxu0 0
        %972 = vmatpush.bf16.msra.mxu0 0
        %973 = vmatpush.bf16.msra.mxu0 0
        %974 = vmatpush.bf16.msra.mxu0 0
        %975 = vmatpush.bf16.msra.mxu0 %v962
        %976 = vmatpush.bf16.msra.mxu0 %v961
        %977 = vmatmul.bf16.gmra.mxu0 %v967
        %v978 = vpop.f32.mrf.mxu0
        %v979 = vadd.f32 %v951, %v978
        %v980 = vpop.f32.mrf.mxu0
        %v981 = vadd.f32 %v951, %v980
        %982 = vdwg.mxu0
        %v983 = vmax.f32 %v979, 0.0
        %v984 = vmax.f32 %v981, 0.0
        %v985 = vpack.c.bf16 %v984, %v983
        %v986 = vld [vmem:[%s7] sm:$0xff]
        %v987 = vld [vmem:[%s7 + $0x8] sm:$0xff]
        %v988 = vld [vmem:[%s7 + $0x10] sm:$0xff]
        %v989 = vld [vmem:[%s7 + $0x18] sm:$0xf]
        %v990 = vld [vmem:[%s7 + $0x1c] sm:$0xff]
        %v991 = vld [vmem:[%s7 + $0x24] sm:$0xff]
        %v992 = vld [vmem:[%s7 + $0x2c] sm:$0xff]
        %v993 = vld [vmem:[%s7 + $0x34] sm:$0xf]
        %v994 = vld [vmem:[%s7 + $0x38] sm:$0xff]
        %v995 = vld [vmem:[%s7 + $0x40] sm:$0xff]
        %v996 = vld [vmem:[%s7 + $0x48] sm:$0xff]
        %v997 = vld [vmem:[%s7 + $0x50] sm:$0xf]
        %v998 = vld [vmem:[%s7 + $0x54] sm:$0xff]
        %v999 = vld [vmem:[%s7 + $0x5c] sm:$0xff]
        %v1000 = vld [vmem:[%s7 + $0x64] sm:$0xff]
        %v1001 = vld [vmem:[%s7 + $0x6c] sm:$0xf]
        %v1002 = vld [vmem:[%s7 + $0x70] sm:$0xff]
        %v1003 = vld [vmem:[%s7 + $0x78] sm:$0xff]
        %v1004 = vld [vmem:[%s7 + $0x80] sm:$0xff]
        %v1005 = vld [vmem:[%s7 + $0x88] sm:$0xf]
        %v1006 = vld [vmem:[%s7 + $0x8c] sm:$0xff]
        %v1007 = vld [vmem:[%s7 + $0x94] sm:$0xff]
        %v1008 = vld [vmem:[%s7 + $0x9c] sm:$0xff]
        %v1009 = vld [vmem:[%s7 + $0xa4] sm:$0xf]
        %v1010 = vld [vmem:[%s7 + $0xa8] sm:$0xff]
        %v1011 = vld [vmem:[%s7 + $0xb0] sm:$0xff]
        %v1012 = vld [vmem:[%s7 + $0xb8] sm:$0xff]
        %v1013 = vld [vmem:[%s7 + $0xc0] sm:$0xf]
        %v1014 = vld [vmem:[%s7 + $0xc4] sm:$0xff]
        %v1015 = vld [vmem:[%s7 + $0xcc] sm:$0xff]
        %v1016 = vld [vmem:[%s7 + $0xd4] sm:$0xff]
        %v1017 = vld [vmem:[%s7 + $0xdc] sm:$0xf]
        %v1018 = vld [vmem:[%s7 + $0xe0] sm:$0xff]
        %v1019 = vld [vmem:[%s7 + $0xe8] sm:$0xff]
        %v1020 = vld [vmem:[%s7 + $0xf0] sm:$0xff]
        %v1021 = vld [vmem:[%s7 + $0xf8] sm:$0xf]
        %v1022 = vld [vmem:[%s7 + $0xfc] sm:$0xff]
        %v1023 = vld [vmem:[%s7 + $0x104] sm:$0xff]
        %v1024 = vld [vmem:[%s7 + $0x10c] sm:$0xff]
        %v1025 = vld [vmem:[%s7 + $0x114] sm:$0xf]
        %v1026 = vld [vmem:[%s7 + $0x118] sm:$0xff]
        %v1027 = vld [vmem:[%s7 + $0x120] sm:$0xff]
        %v1028 = vld [vmem:[%s7 + $0x128] sm:$0xff]
        %v1029 = vld [vmem:[%s7 + $0x130] sm:$0xf]
        %v1030 = vld [vmem:[%s7 + $0x134] sm:$0xff]
        %v1031 = vld [vmem:[%s7 + $0x13c] sm:$0xff]
        %v1032 = vld [vmem:[%s7 + $0x144] sm:$0xff]
        %v1033 = vld [vmem:[%s7 + $0x14c] sm:$0xf]
        %v1034 = vld [vmem:[%s7 + $0x150] sm:$0xff]
        %v1035 = vld [vmem:[%s7 + $0x158] sm:$0xff]
        %v1036 = vld [vmem:[%s7 + $0x160] sm:$0xff]
        %v1037 = vld [vmem:[%s7 + $0x168] sm:$0xf]
        %v1038 = vld [vmem:[%s7 + $0x16c] sm:$0xff]
        %v1039 = vld [vmem:[%s7 + $0x174] sm:$0xff]
        %v1040 = vld [vmem:[%s7 + $0x17c] sm:$0xff]
        %v1041 = vld [vmem:[%s7 + $0x184] sm:$0xf]
        %v1042 = vld [vmem:[%s7 + $0x188] sm:$0xff]
        %v1043 = vld [vmem:[%s7 + $0x190] sm:$0xff]
        %v1044 = vld [vmem:[%s7 + $0x198] sm:$0xff]
        %v1045 = vld [vmem:[%s7 + $0x1a0] sm:$0xf]
        %v1046 = vld [vmem:[%s7 + $0x1a4] sm:$0xff]
        %v1047 = vld [vmem:[%s7 + $0x1ac] sm:$0xff]
        %v1048 = vld [vmem:[%s7 + $0x1b4] sm:$0xff]
        %v1049 = vld [vmem:[%s7 + $0x1bc] sm:$0xf]
        %v1050 = vld [vmem:[%s8] sm:$0x7f]
        %v1052 = vperm.slane %v1050, 0
        %v1053 = vperm.slane %v1050, 1
        %v1054 = vperm.slane %v1050, 2
        %v1055 = vperm.slane %v1050, 3
        %v1056 = vperm.slane %v1050, 4
        %v1057 = vperm.slane %v1050, 5
        %v1058 = vperm.slane %v1050, 6
        %v1130 = vunpack.c.l.b16 %v986
        %v1131 = vunpack.c.h.b16 %v986
        %v1132 = vunpack.c.l.b16 %v987
        %v1133 = vunpack.c.h.b16 %v987
        %v1134 = vunpack.c.l.b16 %v988
        %v1135 = vunpack.c.h.b16 %v988
        %v1136 = vunpack.c.l.b16 %v989
        %v1137 = vunpack.c.l.b16 %v990
        %v1138 = vunpack.c.h.b16 %v990
        %v1139 = vunpack.c.l.b16 %v991
        %v1140 = vunpack.c.h.b16 %v991
        %v1141 = vunpack.c.l.b16 %v992
        %v1142 = vunpack.c.h.b16 %v992
        %v1143 = vunpack.c.l.b16 %v993
        %v1144 = vunpack.c.l.b16 %v994
        %v1145 = vunpack.c.h.b16 %v994
        %v1146 = vunpack.c.l.b16 %v995
        %v1147 = vunpack.c.h.b16 %v995
        %v1148 = vunpack.c.l.b16 %v996
        %v1149 = vunpack.c.h.b16 %v996
        %v1150 = vunpack.c.l.b16 %v997
        %v1151 = vunpack.c.l.b16 %v998
        %v1152 = vunpack.c.h.b16 %v998
        %v1153 = vunpack.c.l.b16 %v999
        %v1154 = vunpack.c.h.b16 %v999
        %v1155 = vunpack.c.l.b16 %v1000
        %v1156 = vunpack.c.h.b16 %v1000
        %v1157 = vunpack.c.l.b16 %v1001
        %v1158 = vunpack.c.l.b16 %v1002
        %v1159 = vunpack.c.h.b16 %v1002
        %v1160 = vunpack.c.l.b16 %v1003
        %v1161 = vunpack.c.h.b16 %v1003
        %v1162 = vunpack.c.l.b16 %v1004
        %v1163 = vunpack.c.h.b16 %v1004
        %v1164 = vunpack.c.l.b16 %v1005
        %v1165 = vunpack.c.l.b16 %v1006
        %v1166 = vunpack.c.h.b16 %v1006
        %v1167 = vunpack.c.l.b16 %v1007
        %v1168 = vunpack.c.h.b16 %v1007
        %v1169 = vunpack.c.l.b16 %v1008
        %v1170 = vunpack.c.h.b16 %v1008
        %v1171 = vunpack.c.l.b16 %v1009
        %v1172 = vunpack.c.l.b16 %v1010
        %v1173 = vunpack.c.h.b16 %v1010
        %v1174 = vunpack.c.l.b16 %v1011
        %v1175 = vunpack.c.h.b16 %v1011
        %v1176 = vunpack.c.l.b16 %v1012
        %v1177 = vunpack.c.h.b16 %v1012
        %v1178 = vunpack.c.l.b16 %v1013
        %v1179 = vunpack.c.l.b16 %v1014
        %v1180 = vunpack.c.h.b16 %v1014
        %v1181 = vunpack.c.l.b16 %v1015
        %v1182 = vunpack.c.h.b16 %v1015
        %v1183 = vunpack.c.l.b16 %v1016
        %v1184 = vunpack.c.h.b16 %v1016
        %v1185 = vunpack.c.l.b16 %v1017
        %v1186 = vunpack.c.l.b16 %v1018
        %v1187 = vunpack.c.h.b16 %v1018
        %v1188 = vunpack.c.l.b16 %v1019
        %v1189 = vunpack.c.h.b16 %v1019
        %v1190 = vunpack.c.l.b16 %v1020
        %v1191 = vunpack.c.h.b16 %v1020
        %v1192 = vunpack.c.l.b16 %v1021
        %v1193 = vunpack.c.l.b16 %v1022
        %v1194 = vunpack.c.h.b16 %v1022
        %v1195 = vunpack.c.l.b16 %v1023
        %v1196 = vunpack.c.h.b16 %v1023
        %v1197 = vunpack.c.l.b16 %v1024
        %v1198 = vunpack.c.h.b16 %v1024
        %v1199 = vunpack.c.l.b16 %v1025
        %v1200 = vunpack.c.l.b16 %v1026
        %v1201 = vunpack.c.h.b16 %v1026
        %v1202 = vunpack.c.l.b16 %v1027
        %v1203 = vunpack.c.h.b16 %v1027
        %v1204 = vunpack.c.l.b16 %v1028
        %v1205 = vunpack.c.h.b16 %v1028
        %v1206 = vunpack.c.l.b16 %v1029
        %v1207 = vunpack.c.l.b16 %v1030
        %v1208 = vunpack.c.h.b16 %v1030
        %v1209 = vunpack.c.l.b16 %v1031
        %v1210 = vunpack.c.h.b16 %v1031
        %v1211 = vunpack.c.l.b16 %v1032
        %v1212 = vunpack.c.h.b16 %v1032
        %v1213 = vunpack.c.l.b16 %v1033
        %v1214 = vunpack.c.l.b16 %v1034
        %v1215 = vunpack.c.h.b16 %v1034
        %v1216 = vunpack.c.l.b16 %v1035
        %v1217 = vunpack.c.h.b16 %v1035
        %v1218 = vunpack.c.l.b16 %v1036
        %v1219 = vunpack.c.h.b16 %v1036
        %v1220 = vunpack.c.l.b16 %v1037
        %v1221 = vunpack.c.l.b16 %v1038
        %v1222 = vunpack.c.h.b16 %v1038
        %v1223 = vunpack.c.l.b16 %v1039
        %v1224 = vunpack.c.h.b16 %v1039
        %v1225 = vunpack.c.l.b16 %v1040
        %v1226 = vunpack.c.h.b16 %v1040
        %v1227 = vunpack.c.l.b16 %v1041
        %v1228 = vunpack.c.l.b16 %v1042
        %v1229 = vunpack.c.h.b16 %v1042
        %v1230 = vunpack.c.l.b16 %v1043
        %v1231 = vunpack.c.h.b16 %v1043
        %v1232 = vunpack.c.l.b16 %v1044
        %v1233 = vunpack.c.h.b16 %v1044
        %v1234 = vunpack.c.l.b16 %v1045
        %v1235 = vunpack.c.l.b16 %v1046
        %v1236 = vunpack.c.h.b16 %v1046
        %v1237 = vunpack.c.l.b16 %v1047
        %v1238 = vunpack.c.h.b16 %v1047
        %v1239 = vunpack.c.l.b16 %v1048
        %v1240 = vunpack.c.h.b16 %v1048
        %v1241 = vunpack.c.l.b16 %v1049
        %v1242 = vpack.c.b16 %v1137, %v1130
        %v1243 = vpack.c.b16 %v1138, %v1131
        %v1244 = vpack.c.b16 %v1139, %v1132
        %v1245 = vpack.c.b16 %v1140, %v1133
        %v1246 = vpack.c.b16 %v1141, %v1134
        %v1247 = vpack.c.b16 %v1142, %v1135
        %v1248 = vpack.c.b16 %v1143, %v1136
        %v1249 = vpack.c.b16 %v1151, %v1144
        %v1250 = vpack.c.b16 %v1152, %v1145
        %v1251 = vpack.c.b16 %v1153, %v1146
        %v1252 = vpack.c.b16 %v1154, %v1147
        %v1253 = vpack.c.b16 %v1155, %v1148
        %v1254 = vpack.c.b16 %v1156, %v1149
        %v1255 = vpack.c.b16 %v1157, %v1150
        %v1256 = vpack.c.b16 %v1165, %v1158
        %v1257 = vpack.c.b16 %v1166, %v1159
        %v1258 = vpack.c.b16 %v1167, %v1160
        %v1259 = vpack.c.b16 %v1168, %v1161
        %v1260 = vpack.c.b16 %v1169, %v1162
        %v1261 = vpack.c.b16 %v1170, %v1163
        %v1262 = vpack.c.b16 %v1171, %v1164
        %v1263 = vpack.c.b16 %v1179, %v1172
        %v1264 = vpack.c.b16 %v1180, %v1173
        %v1265 = vpack.c.b16 %v1181, %v1174
        %v1266 = vpack.c.b16 %v1182, %v1175
        %v1267 = vpack.c.b16 %v1183, %v1176
        %v1268 = vpack.c.b16 %v1184, %v1177
        %v1269 = vpack.c.b16 %v1185, %v1178
        %v1270 = vpack.c.b16 %v1193, %v1186
        %v1271 = vpack.c.b16 %v1194, %v1187
        %v1272 = vpack.c.b16 %v1195, %v1188
        %v1273 = vpack.c.b16 %v1196, %v1189
        %v1274 = vpack.c.b16 %v1197, %v1190
        %v1275 = vpack.c.b16 %v1198, %v1191
        %v1276 = vpack.c.b16 %v1199, %v1192
        %v1277 = vpack.c.b16 %v1207, %v1200
        %v1278 = vpack.c.b16 %v1208, %v1201
        %v1279 = vpack.c.b16 %v1209, %v1202
        %v1280 = vpack.c.b16 %v1210, %v1203
        %v1281 = vpack.c.b16 %v1211, %v1204
        %v1282 = vpack.c.b16 %v1212, %v1205
        %v1283 = vpack.c.b16 %v1213, %v1206
        %v1284 = vpack.c.b16 %v1221, %v1214
        %v1285 = vpack.c.b16 %v1222, %v1215
        %v1286 = vpack.c.b16 %v1223, %v1216
        %v1287 = vpack.c.b16 %v1224, %v1217
        %v1288 = vpack.c.b16 %v1225, %v1218
        %v1289 = vpack.c.b16 %v1226, %v1219
        %v1290 = vpack.c.b16 %v1227, %v1220
        %v1291 = vpack.c.b16 %v1235, %v1228
        %v1292 = vpack.c.b16 %v1236, %v1229
        %v1293 = vpack.c.b16 %v1237, %v1230
        %v1294 = vpack.c.b16 %v1238, %v1231
        %v1295 = vpack.c.b16 %v1239, %v1232
        %v1296 = vpack.c.b16 %v1240, %v1233
        %v1297 = vpack.c.b16 %v1241, %v1234
        %1354 = vmatpush.bf16.msra.mxu0 %v1291
        %1355 = vmatpush.bf16.msra.mxu0 %v1284
        %1356 = vmatpush.bf16.msra.mxu0 %v1277
        %1357 = vmatpush.bf16.msra.mxu0 %v1270
        %1358 = vmatpush.bf16.msra.mxu0 %v1263
        %1359 = vmatpush.bf16.msra.mxu0 %v1256
        %1360 = vmatpush.bf16.msra.mxu0 %v1249
        %1361 = vmatpush.bf16.msra.mxu0 %v1242
        %1362 = vmatmul.bf16.gmra.mxu0 %v985
        %v1363 = vpop.f32.mrf.mxu0
        %v1364 = vadd.f32 %v1052, %v1363
        %v1365 = vpop.f32.mrf.mxu0
        %v1366 = vadd.f32 %v1052, %v1365
        %1367 = vdwg.mxu0
        %1368 = vmatpush.bf16.msra.mxu0 %v1292
        %1369 = vmatpush.bf16.msra.mxu0 %v1285
        %1370 = vmatpush.bf16.msra.mxu0 %v1278
        %1371 = vmatpush.bf16.msra.mxu0 %v1271
        %1372 = vmatpush.bf16.msra.mxu0 %v1264
        %1373 = vmatpush.bf16.msra.mxu0 %v1257
        %1374 = vmatpush.bf16.msra.mxu0 %v1250
        %1375 = vmatpush.bf16.msra.mxu0 %v1243
        %1376 = vmatmul.bf16.gmra.mxu0 %v985
        %v1377 = vpop.f32.mrf.mxu0
        %v1378 = vadd.f32 %v1053, %v1377
        %v1379 = vpop.f32.mrf.mxu0
        %v1380 = vadd.f32 %v1053, %v1379
        %1381 = vdwg.mxu0
        %1382 = vmatpush.bf16.msra.mxu0 %v1293
        %1383 = vmatpush.bf16.msra.mxu0 %v1286
        %1384 = vmatpush.bf16.msra.mxu0 %v1279
        %1385 = vmatpush.bf16.msra.mxu0 %v1272
        %1386 = vmatpush.bf16.msra.mxu0 %v1265
        %1387 = vmatpush.bf16.msra.mxu0 %v1258
        %1388 = vmatpush.bf16.msra.mxu0 %v1251
        %1389 = vmatpush.bf16.msra.mxu0 %v1244
        %1390 = vmatmul.bf16.gmra.mxu0 %v985
        %v1391 = vpop.f32.mrf.mxu0
        %v1392 = vadd.f32 %v1054, %v1391
        %v1393 = vpop.f32.mrf.mxu0
        %v1394 = vadd.f32 %v1054, %v1393
        %1395 = vdwg.mxu0
        %1396 = vmatpush.bf16.msra.mxu0 %v1294
        %1397 = vmatpush.bf16.msra.mxu0 %v1287
        %1398 = vmatpush.bf16.msra.mxu0 %v1280
        %1399 = vmatpush.bf16.msra.mxu0 %v1273
        %1400 = vmatpush.bf16.msra.mxu0 %v1266
        %1401 = vmatpush.bf16.msra.mxu0 %v1259
        %1402 = vmatpush.bf16.msra.mxu0 %v1252
        %1403 = vmatpush.bf16.msra.mxu0 %v1245
        %1404 = vmatmul.bf16.gmra.mxu0 %v985
        %v1405 = vpop.f32.mrf.mxu0
        %v1406 = vadd.f32 %v1055, %v1405
        %v1407 = vpop.f32.mrf.mxu0
        %v1408 = vadd.f32 %v1055, %v1407
        %1409 = vdwg.mxu0
        %1410 = vmatpush.bf16.msra.mxu0 %v1295
        %1411 = vmatpush.bf16.msra.mxu0 %v1288
        %1412 = vmatpush.bf16.msra.mxu0 %v1281
        %1413 = vmatpush.bf16.msra.mxu0 %v1274
        %1414 = vmatpush.bf16.msra.mxu0 %v1267
        %1415 = vmatpush.bf16.msra.mxu0 %v1260
        %1416 = vmatpush.bf16.msra.mxu0 %v1253
        %1417 = vmatpush.bf16.msra.mxu0 %v1246
        %1418 = vmatmul.bf16.gmra.mxu0 %v985
        %v1419 = vpop.f32.mrf.mxu0
        %v1420 = vadd.f32 %v1056, %v1419
        %v1421 = vpop.f32.mrf.mxu0
        %v1422 = vadd.f32 %v1056, %v1421
        %1423 = vdwg.mxu0
        %1424 = vmatpush.bf16.msra.mxu0 %v1296
        %1425 = vmatpush.bf16.msra.mxu0 %v1289
        %1426 = vmatpush.bf16.msra.mxu0 %v1282
        %1427 = vmatpush.bf16.msra.mxu0 %v1275
        %1428 = vmatpush.bf16.msra.mxu0 %v1268
        %1429 = vmatpush.bf16.msra.mxu0 %v1261
        %1430 = vmatpush.bf16.msra.mxu0 %v1254
        %1431 = vmatpush.bf16.msra.mxu0 %v1247
        %1432 = vmatmul.bf16.gmra.mxu0 %v985
        %v1433 = vpop.f32.mrf.mxu0
        %v1434 = vadd.f32 %v1057, %v1433
        %v1435 = vpop.f32.mrf.mxu0
        %v1436 = vadd.f32 %v1057, %v1435
        %1437 = vdwg.mxu0
        %1438 = vmatpush.bf16.msra.mxu0 %v1297
        %1439 = vmatpush.bf16.msra.mxu0 %v1290
        %1440 = vmatpush.bf16.msra.mxu0 %v1283
        %1441 = vmatpush.bf16.msra.mxu0 %v1276
        %1442 = vmatpush.bf16.msra.mxu0 %v1269
        %1443 = vmatpush.bf16.msra.mxu0 %v1262
        %1444 = vmatpush.bf16.msra.mxu0 %v1255
        %1445 = vmatpush.bf16.msra.mxu0 %v1248
        %1446 = vmatmul.bf16.gmra.mxu0 %v985
        %v1447 = vpop.f32.mrf.mxu0
        %v1448 = vadd.f32 %v1058, %v1447
        %v1449 = vpop.f32.mrf.mxu0
        %v1450 = vadd.f32 %v1058, %v1449
        %1451 = vdwg.mxu0
        %v1452 = vxor.u32 %v1364, 2147483648
        %v1453 = vxor.u32 %v1378, 2147483648
        %v1454 = vxor.u32 %v1392, 2147483648
        %v1455 = vxor.u32 %v1406, 2147483648
        %v1456 = vxor.u32 %v1420, 2147483648
        %v1457 = vxor.u32 %v1434, 2147483648
        %v1458 = vxor.u32 %v1448, 2147483648
        %v1459 = vxor.u32 %v1366, 2147483648
        %v1460 = vxor.u32 %v1380, 2147483648
        %v1461 = vxor.u32 %v1394, 2147483648
        %v1462 = vxor.u32 %v1408, 2147483648
        %v1463 = vxor.u32 %v1422, 2147483648
        %v1464 = vxor.u32 %v1436, 2147483648
        %v1465 = vxor.u32 %v1450, 2147483648
        %v1466 = vmul.f32 %v1452, 1.442695
        %v1467 = vpow.pop %v1466
        %v1468 = vmul.f32 %v1453, 1.442695
        %v1469 = vpow.pop %v1468
        %v1470 = vmul.f32 %v1454, 1.442695
        %v1471 = vpow.pop %v1470
        %v1472 = vmul.f32 %v1455, 1.442695
        %v1473 = vpow.pop %v1472
        %v1474 = vmul.f32 %v1456, 1.442695
        %v1475 = vpow.pop %v1474
        %v1476 = vmul.f32 %v1457, 1.442695
        %v1477 = vpow.pop %v1476
        %v1478 = vmul.f32 %v1458, 1.442695
        %v1479 = vpow.pop %v1478
        %v1480 = vmul.f32 %v1459, 1.442695
        %v1481 = vpow.pop %v1480
        %v1482 = vmul.f32 %v1460, 1.442695
        %v1483 = vpow.pop %v1482
        %v1484 = vmul.f32 %v1461, 1.442695
        %v1485 = vpow.pop %v1484
        %v1486 = vmul.f32 %v1462, 1.442695
        %v1487 = vpow.pop %v1486
        %v1488 = vmul.f32 %v1463, 1.442695
        %v1489 = vpow.pop %v1488
        %v1490 = vmul.f32 %v1464, 1.442695
        %v1491 = vpow.pop %v1490
        %v1492 = vmul.f32 %v1465, 1.442695
        %v1493 = vpow.pop %v1492
        %v1494 = vadd.f32 %v1467, 1.0
        %v1495 = vadd.f32 %v1469, 1.0
        %v1496 = vadd.f32 %v1471, 1.0
        %v1497 = vadd.f32 %v1473, 1.0
        %v1498 = vadd.f32 %v1475, 1.0
        %v1499 = vadd.f32 %v1477, 1.0
        %v1500 = vadd.f32 %v1479, 1.0
        %v1501 = vadd.f32 %v1481, 1.0
        %v1502 = vadd.f32 %v1483, 1.0
        %v1503 = vadd.f32 %v1485, 1.0
        %v1504 = vadd.f32 %v1487, 1.0
        %v1505 = vadd.f32 %v1489, 1.0
        %v1506 = vadd.f32 %v1491, 1.0
        %v1507 = vadd.f32 %v1493, 1.0
        %v1508 = vrcp.pop %v1494
        %v1509 = vmul.f32 %v1494, %v1508
        %v1510 = vsub.f32 1.0, %v1509
        %v1511 = vmul.f32 %v1508, %v1510
        %v1512 = vadd.f32 %v1508, %v1511
        %vm1513 = vweird.f32 %v1494
        %vm1514 = vweird.f32 %v1508
        %vm1515 = vmor %vm1513, %vm1514
        %v1516 = vsel %vm1515, %v1508, %v1512
        %v1517 = vand.u32 2147483647, %v1494
        %vm1518 = vcmp.eq.f32.partialorder %v1517, 8.507059e+37
        %v1519 = vand.u32 %v1494, 2147483648
        %v1520 = vor.u32 1.1754944e-38, %v1519
        %v1521 = vsel %vm1518, %v1520, %v1516
        %v1522 = vmul.f32 1.0, %v1521
        %v1523 = vrcp.pop %v1495
        %v1524 = vmul.f32 %v1495, %v1523
        %v1525 = vsub.f32 1.0, %v1524
        %v1526 = vmul.f32 %v1523, %v1525
        %v1527 = vadd.f32 %v1523, %v1526
        %vm1528 = vweird.f32 %v1495
        %vm1529 = vweird.f32 %v1523
        %vm1530 = vmor %vm1528, %vm1529
        %v1531 = vsel %vm1530, %v1523, %v1527
        %v1532 = vand.u32 2147483647, %v1495
        %vm1533 = vcmp.eq.f32.partialorder %v1532, 8.507059e+37
        %v1534 = vand.u32 %v1495, 2147483648
        %v1535 = vor.u32 1.1754944e-38, %v1534
        %v1536 = vsel %vm1533, %v1535, %v1531
        %v1537 = vmul.f32 1.0, %v1536
        %v1538 = vrcp.pop %v1496
        %v1539 = vmul.f32 %v1496, %v1538
        %v1540 = vsub.f32 1.0, %v1539
        %v1541 = vmul.f32 %v1538, %v1540
        %v1542 = vadd.f32 %v1538, %v1541
        %vm1543 = vweird.f32 %v1496
        %vm1544 = vweird.f32 %v1538
        %vm1545 = vmor %vm1543, %vm1544
        %v1546 = vsel %vm1545, %v1538, %v1542
        %v1547 = vand.u32 2147483647, %v1496
        %vm1548 = vcmp.eq.f32.partialorder %v1547, 8.507059e+37
        %v1549 = vand.u32 %v1496, 2147483648
        %v1550 = vor.u32 1.1754944e-38, %v1549
        %v1551 = vsel %vm1548, %v1550, %v1546
        %v1552 = vmul.f32 1.0, %v1551
        %v1553 = vrcp.pop %v1497
        %v1554 = vmul.f32 %v1497, %v1553
        %v1555 = vsub.f32 1.0, %v1554
        %v1556 = vmul.f32 %v1553, %v1555
        %v1557 = vadd.f32 %v1553, %v1556
        %vm1558 = vweird.f32 %v1497
        %vm1559 = vweird.f32 %v1553
        %vm1560 = vmor %vm1558, %vm1559
        %v1561 = vsel %vm1560, %v1553, %v1557
        %v1562 = vand.u32 2147483647, %v1497
        %vm1563 = vcmp.eq.f32.partialorder %v1562, 8.507059e+37
        %v1564 = vand.u32 %v1497, 2147483648
        %v1565 = vor.u32 1.1754944e-38, %v1564
        %v1566 = vsel %vm1563, %v1565, %v1561
        %v1567 = vmul.f32 1.0, %v1566
        %v1568 = vrcp.pop %v1498
        %v1569 = vmul.f32 %v1498, %v1568
        %v1570 = vsub.f32 1.0, %v1569
        %v1571 = vmul.f32 %v1568, %v1570
        %v1572 = vadd.f32 %v1568, %v1571
        %vm1573 = vweird.f32 %v1498
        %vm1574 = vweird.f32 %v1568
        %vm1575 = vmor %vm1573, %vm1574
        %v1576 = vsel %vm1575, %v1568, %v1572
        %v1577 = vand.u32 2147483647, %v1498
        %vm1578 = vcmp.eq.f32.partialorder %v1577, 8.507059e+37
        %v1579 = vand.u32 %v1498, 2147483648
        %v1580 = vor.u32 1.1754944e-38, %v1579
        %v1581 = vsel %vm1578, %v1580, %v1576
        %v1582 = vmul.f32 1.0, %v1581
        %v1583 = vrcp.pop %v1499
        %v1584 = vmul.f32 %v1499, %v1583
        %v1585 = vsub.f32 1.0, %v1584
        %v1586 = vmul.f32 %v1583, %v1585
        %v1587 = vadd.f32 %v1583, %v1586
        %vm1588 = vweird.f32 %v1499
        %vm1589 = vweird.f32 %v1583
        %vm1590 = vmor %vm1588, %vm1589
        %v1591 = vsel %vm1590, %v1583, %v1587
        %v1592 = vand.u32 2147483647, %v1499
        %vm1593 = vcmp.eq.f32.partialorder %v1592, 8.507059e+37
        %v1594 = vand.u32 %v1499, 2147483648
        %v1595 = vor.u32 1.1754944e-38, %v1594
        %v1596 = vsel %vm1593, %v1595, %v1591
        %v1597 = vmul.f32 1.0, %v1596
        %v1598 = vrcp.pop %v1500
        %v1599 = vmul.f32 %v1500, %v1598
        %v1600 = vsub.f32 1.0, %v1599
        %v1601 = vmul.f32 %v1598, %v1600
        %v1602 = vadd.f32 %v1598, %v1601
        %vm1603 = vweird.f32 %v1500
        %vm1604 = vweird.f32 %v1598
        %vm1605 = vmor %vm1603, %vm1604
        %v1606 = vsel %vm1605, %v1598, %v1602
        %v1607 = vand.u32 2147483647, %v1500
        %vm1608 = vcmp.eq.f32.partialorder %v1607, 8.507059e+37
        %v1609 = vand.u32 %v1500, 2147483648
        %v1610 = vor.u32 1.1754944e-38, %v1609
        %v1611 = vsel %vm1608, %v1610, %v1606
        %v1612 = vmul.f32 1.0, %v1611
        %v1613 = vrcp.pop %v1501
        %v1614 = vmul.f32 %v1501, %v1613
        %v1615 = vsub.f32 1.0, %v1614
        %v1616 = vmul.f32 %v1613, %v1615
        %v1617 = vadd.f32 %v1613, %v1616
        %vm1618 = vweird.f32 %v1501
        %vm1619 = vweird.f32 %v1613
        %vm1620 = vmor %vm1618, %vm1619
        %v1621 = vsel %vm1620, %v1613, %v1617
        %v1622 = vand.u32 2147483647, %v1501
        %vm1623 = vcmp.eq.f32.partialorder %v1622, 8.507059e+37
        %v1624 = vand.u32 %v1501, 2147483648
        %v1625 = vor.u32 1.1754944e-38, %v1624
        %v1626 = vsel %vm1623, %v1625, %v1621
        %v1627 = vmul.f32 1.0, %v1626
        %v1628 = vrcp.pop %v1502
        %v1629 = vmul.f32 %v1502, %v1628
        %v1630 = vsub.f32 1.0, %v1629
        %v1631 = vmul.f32 %v1628, %v1630
        %v1632 = vadd.f32 %v1628, %v1631
        %vm1633 = vweird.f32 %v1502
        %vm1634 = vweird.f32 %v1628
        %vm1635 = vmor %vm1633, %vm1634
        %v1636 = vsel %vm1635, %v1628, %v1632
        %v1637 = vand.u32 2147483647, %v1502
        %vm1638 = vcmp.eq.f32.partialorder %v1637, 8.507059e+37
        %v1639 = vand.u32 %v1502, 2147483648
        %v1640 = vor.u32 1.1754944e-38, %v1639
        %v1641 = vsel %vm1638, %v1640, %v1636
        %v1642 = vmul.f32 1.0, %v1641
        %v1643 = vrcp.pop %v1503
        %v1644 = vmul.f32 %v1503, %v1643
        %v1645 = vsub.f32 1.0, %v1644
        %v1646 = vmul.f32 %v1643, %v1645
        %v1647 = vadd.f32 %v1643, %v1646
        %vm1648 = vweird.f32 %v1503
        %vm1649 = vweird.f32 %v1643
        %vm1650 = vmor %vm1648, %vm1649
        %v1651 = vsel %vm1650, %v1643, %v1647
        %v1652 = vand.u32 2147483647, %v1503
        %vm1653 = vcmp.eq.f32.partialorder %v1652, 8.507059e+37
        %v1654 = vand.u32 %v1503, 2147483648
        %v1655 = vor.u32 1.1754944e-38, %v1654
        %v1656 = vsel %vm1653, %v1655, %v1651
        %v1657 = vmul.f32 1.0, %v1656
        %v1658 = vrcp.pop %v1504
        %v1659 = vmul.f32 %v1504, %v1658
        %v1660 = vsub.f32 1.0, %v1659
        %v1661 = vmul.f32 %v1658, %v1660
        %v1662 = vadd.f32 %v1658, %v1661
        %vm1663 = vweird.f32 %v1504
        %vm1664 = vweird.f32 %v1658
        %vm1665 = vmor %vm1663, %vm1664
        %v1666 = vsel %vm1665, %v1658, %v1662
        %v1667 = vand.u32 2147483647, %v1504
        %vm1668 = vcmp.eq.f32.partialorder %v1667, 8.507059e+37
        %v1669 = vand.u32 %v1504, 2147483648
        %v1670 = vor.u32 1.1754944e-38, %v1669
        %v1671 = vsel %vm1668, %v1670, %v1666
        %v1672 = vmul.f32 1.0, %v1671
        %v1673 = vrcp.pop %v1505
        %v1674 = vmul.f32 %v1505, %v1673
        %v1675 = vsub.f32 1.0, %v1674
        %v1676 = vmul.f32 %v1673, %v1675
        %v1677 = vadd.f32 %v1673, %v1676
        %vm1678 = vweird.f32 %v1505
        %vm1679 = vweird.f32 %v1673
        %vm1680 = vmor %vm1678, %vm1679
        %v1681 = vsel %vm1680, %v1673, %v1677
        %v1682 = vand.u32 2147483647, %v1505
        %vm1683 = vcmp.eq.f32.partialorder %v1682, 8.507059e+37
        %v1684 = vand.u32 %v1505, 2147483648
        %v1685 = vor.u32 1.1754944e-38, %v1684
        %v1686 = vsel %vm1683, %v1685, %v1681
        %v1687 = vmul.f32 1.0, %v1686
        %v1688 = vrcp.pop %v1506
        %v1689 = vmul.f32 %v1506, %v1688
        %v1690 = vsub.f32 1.0, %v1689
        %v1691 = vmul.f32 %v1688, %v1690
        %v1692 = vadd.f32 %v1688, %v1691
        %vm1693 = vweird.f32 %v1506
        %vm1694 = vweird.f32 %v1688
        %vm1695 = vmor %vm1693, %vm1694
        %v1696 = vsel %vm1695, %v1688, %v1692
        %v1697 = vand.u32 2147483647, %v1506
        %vm1698 = vcmp.eq.f32.partialorder %v1697, 8.507059e+37
        %v1699 = vand.u32 %v1506, 2147483648
        %v1700 = vor.u32 1.1754944e-38, %v1699
        %v1701 = vsel %vm1698, %v1700, %v1696
        %v1702 = vmul.f32 1.0, %v1701
        %v1703 = vrcp.pop %v1507
        %v1704 = vmul.f32 %v1507, %v1703
        %v1705 = vsub.f32 1.0, %v1704
        %v1706 = vmul.f32 %v1703, %v1705
        %v1707 = vadd.f32 %v1703, %v1706
        %vm1708 = vweird.f32 %v1507
        %vm1709 = vweird.f32 %v1703
        %vm1710 = vmor %vm1708, %vm1709
        %v1711 = vsel %vm1710, %v1703, %v1707
        %v1712 = vand.u32 2147483647, %v1507
        %vm1713 = vcmp.eq.f32.partialorder %v1712, 8.507059e+37
        %v1714 = vand.u32 %v1507, 2147483648
        %v1715 = vor.u32 1.1754944e-38, %v1714
        %v1716 = vsel %vm1713, %v1715, %v1711
        %v1717 = vmul.f32 1.0, %v1716
        %1718 = vst [vmem:[%s328] sm:$0xff] %v1522
        %1719 = vst [vmem:[%s328 + $0x8] sm:$0xff] %v1537
        %1720 = vst [vmem:[%s328 + $0x10] sm:$0xff] %v1552
        %1721 = vst [vmem:[%s328 + $0x18] sm:$0xff] %v1567
        %1722 = vst [vmem:[%s328 + $0x20] sm:$0xff] %v1582
        %1723 = vst [vmem:[%s328 + $0x28] sm:$0xff] %v1597
        %1724 = vst.msk [vmem:[%s328 + $0x30] sm:$0xff] %vm755, %v1612
        %1725 = vst [vmem:[%s328 + $0x38] sm:$0xff] %v1627
        %1726 = vst [vmem:[%s328 + $0x40] sm:$0xff] %v1642
        %1727 = vst [vmem:[%s328 + $0x48] sm:$0xff] %v1657
        %1728 = vst [vmem:[%s328 + $0x50] sm:$0xff] %v1672
        %1729 = vst [vmem:[%s328 + $0x58] sm:$0xff] %v1687
        %1730 = vst [vmem:[%s328 + $0x60] sm:$0xff] %v1702
        %1731 = vst.msk [vmem:[%s328 + $0x68] sm:$0xff] %vm755, %v1717
        %s1732 = sand.u32 %s225, 1
        %s1733 = scalar_lea.sflag [#allocation3], %s1732
        %s1734 = sand.u32 %s225, 1
        %s1735 = smul.addr %s1734, 112
        %s1736 = scalar_lea.vmem [#allocation2], %s1735
        // Predicated region
        $region57: #{tpu_custom_call.1} parent=55 // pred_check
          %p1737 = pneg %p235
        $region58: #{tpu_custom_call.1} parent=55 // pred_check_branch
          %1739 = sbr.rel (%p1737) target = $region60
        $region59: #{tpu_custom_call.1} parent=55 // pred_region
          %s1740 = smul.u32 2, %s23
          %1742 = vsyncadd %s1733, 0
          %s1743 = smul.addr %s1740, 7
          %s1744 = smul.addr %s1743, 8
          %s1745 = scalar_lea.hbm %s9, %s1744
          %s1746 = sshll.u32 %s1736, 4
          %s1747 = int_to_ptr.vmem [resolvable:$true] %s1746
          %s1748 = sshll.u32 %s1745, 4
          %s1749 = int_to_ptr.hbm [resolvable:$true] %s1748
          %1754 = dma.vmem_to_hbm [thread:$0]  %s1747, 1792, %s1749, %s1733, 896, 896, 56
        $region60: #{tpu_custom_call.1} parent=55 // pred_fallthru
          _
      $region56: #{tpu_custom_call.1} parent=5 // pred_fallthru
        _
      %p1755 = scmp.le.s32.totalorder 2, %s18
      // Predicated region
      $region61: #{tpu_custom_call.1} parent=5 // pred_check
        %p1756 = pneg %p1755
      $region62: #{tpu_custom_call.1} parent=5 // pred_check_branch
        %1758 = sbr.rel (%p1756) target = $region64
      $region63: #{tpu_custom_call.1} parent=5 // pred_region
        %s1759 = ssub.s32 %s18, 2
        // Predicated region
        $region65: #{tpu_custom_call.1} parent=63 // pred_check
          %p1760 = pneg %p241
        $region66: #{tpu_custom_call.1} parent=63 // pred_check_branch
          %1762 = sbr.rel (%p1760) target = $region68
        $region67: #{tpu_custom_call.1} parent=63 // pred_region
          %s1763 = sand.u32 %s226, 1
          %s1764 = scalar_lea.sflag [#allocation3], %s1763
          %s1765 = sand.u32 %s226, 1
          %s1766 = smul.addr %s1765, 112
          %s1767 = scalar_lea.vmem [#allocation2], %s1766
          %1769 = dma.done %s1764, 1792
        $region68: #{tpu_custom_call.1} parent=63 // pred_fallthru
          _
      $region64: #{tpu_custom_call.1} parent=5 // pred_fallthru
        _
    $region6: #{tpu_custom_call.1} parent=1 // loop_footer
      %s22 = sadd.s32 1, %s18
    $region7: #{tpu_custom_call.1} parent=1 // loop_footer_branch
      %17 = sbr.rel target = $region3
    $region8: #{tpu_custom_call.1} parent=1 // loop_exit
      _
    %1770 = vsyncpa [#allocation3], 1
    %s1771 = scalar_lea.sflag [#allocation3], 1
    %1772 = vsyncpa %s1771, 1

</llo_original>
